<compile_context>
chip_gen: v6e
topology: v6e:2x2x1
jax: 0.10.0
libtpu: 0.0.40
codegen_flags: <defaults>
</compile_context>

<pallas_src>
import jax
import jax.numpy as jnp
import numpy as np
from jax import lax
from jax.experimental import pallas as pl
from jax.experimental.pallas import tpu as pltpu


def _round_up(a, b):
    return ((a + b - 1) // b) * b


# ----------------------------- Pallas kernel ------------------------------- #

def _fused_conv3x3_kernel(xa_ref, xb_ref, wt_ref, b_ref, o_ref):
    # xa_ref: (1, TH, W+2, Cin)   main row block of the zero-padded NHWC input
    # xb_ref: (1, 8,  W+2, Cin)   next (8-row aligned) block; only rows 0:2 = halo used
    # wt_ref: (Cout, Kp)          folded weights, tap-major K = 9*Cin zero-padded to Kp
    # b_ref : (Cout, 1)           folded bias (f32)
    # o_ref : (1, Cout, TH*W)     NCHW-flat output block (no Cout lane padding)
    _, th, wp, cin = xa_ref.shape
    w = wp - 2
    cout, kp = wt_ref.shape

    # Stitch the 2-row halo onto the main block -> (TH+2, W+2, Cin).
    x = jnp.concatenate([xa_ref[0], xb_ref[0, 0:2]], axis=0)

    # im2col: nine static tap slices, concatenated along lanes; K zero-padded to a
    # lane multiple so the single MXU contraction runs at full K width.
    taps = [x[dh:dh + th, dw:dw + w, :] for dh in range(3) for dw in range(3)]
    if kp > 9 * cin:
        taps.append(jnp.zeros((th, w, kp - 9 * cin), dtype=x.dtype))
    patches = jnp.concatenate(taps, axis=-1).reshape(th * w, kp)      # (M, Kp)

    # Transposed-output matmul: y_T[o, m] = sum_k wT[o, k] * patches[m, k].
    # Emitting (Cout, M) directly gives lane-dense, unpadded NCHW stores and removes
    # the wrapper-side channel slice + transpose passes.
    y_t = lax.dot_general(wt_ref[...], patches,
                          dimension_numbers=(((1,), (1,)), ((), ())),
                          preferred_element_type=jnp.float32)         # (Cout, M) f32
    y_t = y_t + b_ref[...]                                            # (Cout,1) bcast
    o_ref[0] = y_t.astype(o_ref.dtype)


# ------------------------------ JAX wrapper -------------------------------- #

def conv1x1_convkxk_forward(x_nchw, params, *, row_tile=32,
                            compute_dtype=jnp.bfloat16):
    """Fused forward of IdentityBasedConv1x1 -> BN1+pad(1) -> Conv3x3 -> BN2 (eval BN)."""
    N, Cin, H, W = x_nchw.shape
    Cout = params["conv2_w"].shape[0]
    eps = params["eps"]

    # ---- fold the whole block into one 3x3 conv + bias (eval-mode BN algebra) ----
    k1 = (params["conv1_w"] + params["id1"])[:, :, 0, 0]              # (Cin, Cin): [c, i]
    scale1 = params["bn1_gamma"] * lax.rsqrt(params["bn1_var"] + eps)
    shift1 = params["bn1_beta"] - params["bn1_mean"] * scale1         # == BN1(0) == pad value
    scale2 = params["bn2_gamma"] * lax.rsqrt(params["bn2_var"] + eps)
    shift2 = params["bn2_beta"] - params["bn2_mean"] * scale2

    w2 = params["conv2_w"]                                            # (Cout, Cin, 3, 3)
    w_eff = jnp.einsum("ockl,c,ci,o->klio", w2, scale1, k1, scale2)   # (3,3,Cin,Cout)
    b_eff = jnp.einsum("ockl,c->o", w2, shift1) * scale2 + shift2     # (Cout,)

    K = 9 * Cin
    Kp = _round_up(K, 128)                                            # full-width MXU K
    wT = jnp.pad(w_eff.reshape(K, Cout).T, ((0, 0), (0, Kp - K))).astype(compute_dtype)
    bias = b_eff.reshape(Cout, 1).astype(jnp.float32)

    # ---- row tiling (TH multiple of 8; TH*W lane-multiple when tiled) ----
    th = _round_up(max(1, min(row_tile, H)), 8)
    nb = -(-H // th)
    if nb > 1 and (th * W) % 128 != 0:
        th = _round_up(H, 8)                                          # fall back: one block
        nb = 1

    # ---- input staging: single transpose + zero-pad + cast pass (no halo restage) ----
    HP = nb * th + 8                                                  # room for the 8-row halo spec
    x_nhwc = jnp.transpose(x_nchw, (0, 2, 3, 1))                      # (N, H, W, Cin)
    x_pad = jnp.pad(x_nhwc, ((0, 0), (1, HP - 1 - H), (1, 1), (0, 0)))
    x_pad = x_pad.astype(compute_dtype)                               # (N, HP, W+2, Cin)

    out_flat = pl.pallas_call(
        _fused_conv3x3_kernel,
        out_shape=jax.ShapeDtypeStruct((N, Cout, nb * th * W), jnp.float32),
        grid=(N, nb),
        in_specs=[
            # main TH-row block
            pl.BlockSpec((1, th, W + 2, Cin), lambda n, j: (n, j, 0, 0)),
            # next 8-row-aligned block (supplies the 2 halo rows) of the SAME array
            pl.BlockSpec((1, 8, W + 2, Cin),
                         lambda n, j: (n, (j + 1) * (th // 8), 0, 0)),
            pl.BlockSpec((Cout, Kp), lambda n, j: (0, 0)),             # resident weights
            pl.BlockSpec((Cout, 1), lambda n, j: (0, 0)),              # resident bias
        ],
        out_specs=pl.BlockSpec((1, Cout, th * W), lambda n, j: (n, 0, j)),
        compiler_params=pltpu.CompilerParams(
            dimension_semantics=("parallel", "parallel"),   # megacore-shardable on v7x
            vmem_limit_bytes=48 * 1024 * 1024,              # above 32MiB default, safe on v7x
        ),
    )(x_pad, x_pad, wT, bias)

    # Output is already NCHW-flat: just reshape (free) and drop padded rows if any.
    out = out_flat.reshape(N, Cout, nb * th, W)
    if nb * th > H:
        out = out[:, :, :H, :]
    return out


# --------------------------- pure-JAX reference ----------------------------- #

def _bn_eval(x, gamma, beta, mean, var, eps):
    s = gamma / jnp.sqrt(var + eps)
    return x * s[None, :, None, None] + (beta - mean * s)[None, :, None, None]


def reference_forward(x_nchw, params):
    eps = params["eps"]
    dn = ("NCHW", "OIHW", "NCHW")
    k1 = params["conv1_w"] + params["id1"]
    y = lax.conv_general_dilated(x_nchw, k1, (1, 1), "VALID", dimension_numbers=dn)
    y = _bn_eval(y, params["bn1_gamma"], params["bn1_beta"],
                 params["bn1_mean"], params["bn1_var"], eps)
    pad_vals = params["bn1_beta"] - params["bn1_mean"] * params["bn1_gamma"] / jnp.sqrt(
        params["bn1_var"] + eps)
    yp = jnp.pad(y, ((0, 0), (0, 0), (1, 1), (1, 1)))
    pv = pad_vals[None, :, None]
    yp = yp.at[:, :, 0, :].set(pv)
    yp = yp.at[:, :, -1, :].set(pv)
    yp = yp.at[:, :, :, 0].set(pv)
    yp = yp.at[:, :, :, -1].set(pv)
    z = lax.conv_general_dilated(yp, params["conv2_w"], (1, 1), "VALID",
                                 dimension_numbers=dn)
    z = _bn_eval(z, params["bn2_gamma"], params["bn2_beta"],
                 params["bn2_mean"], params["bn2_var"], eps)
    return z


# --------------------------------- main ------------------------------------ #

if __name__ == "__main__":
    N, Cin, Cout, H, W = 2, 8, 16, 16, 16
    key = jax.random.PRNGKey(0)
    keys = jax.random.split(key, 12)

    # IdentityBasedConv1x1: weight zero-init, identity tensor (groups=1)
    conv1_w = jnp.zeros((Cin, Cin, 1, 1), jnp.float32)
    id1 = jnp.eye(Cin, dtype=jnp.float32).reshape(Cin, Cin, 1, 1)

    params = {
        "eps": 1e-5,
        "conv1_w": conv1_w,
        "id1": id1,
        "bn1_gamma": 1.0 + 0.1 * jax.random.normal(keys[0], (Cin,), jnp.float32),
        "bn1_beta": 0.1 * jax.random.normal(keys[1], (Cin,), jnp.float32),
        "bn1_mean": 0.1 * jax.random.normal(keys[2], (Cin,), jnp.float32),
        "bn1_var": jax.random.uniform(keys[3], (Cin,), jnp.float32, 0.5, 1.5),
        "conv2_w": 0.1 * jax.random.normal(keys[4], (Cout, Cin, 3, 3), jnp.float32),
        "bn2_gamma": 1.0 + 0.1 * jax.random.normal(keys[5], (Cout,), jnp.float32),
        "bn2_beta": 0.1 * jax.random.normal(keys[6], (Cout,), jnp.float32),
        "bn2_mean": 0.1 * jax.random.normal(keys[7], (Cout,), jnp.float32),
        "bn2_var": jax.random.uniform(keys[8], (Cout,), jnp.float32, 0.5, 1.5),
    }

    x = jax.random.normal(keys[9], (N, Cin, H, W), jnp.float32)

    ref = jax.block_until_ready(reference_forward(x, params))

    # f32-operand path: tight numerical check of the fold + kernel plumbing.
    out_f32 = jax.block_until_ready(
        conv1x1_convkxk_forward(x, params, compute_dtype=jnp.float32))
    np.testing.assert_allclose(np.asarray(out_f32), np.asarray(ref),
                               rtol=2e-4, atol=2e-4)

    # Default bf16-operand path (f32 accumulation): looser, bf16-appropriate tolerance.
    out_bf16 = jax.block_until_ready(conv1x1_convkxk_forward(x, params))
    np.testing.assert_allclose(np.asarray(out_bf16), np.asarray(ref),
                               rtol=5e-2, atol=5e-2)

    print("KERNEL_OK")
</pallas_src>

<mosaic_0001>
module attributes {stable_mosaic.version = 11 : i64} {
  func.func @_fused_conv3x3_kernel(%arg0: i32, %arg1: i32, %arg2: memref<1x16x18x8xf32, #tpu.memory_space<vmem>>, %arg3: memref<1x8x18x8xf32, #tpu.memory_space<vmem>>, %arg4: memref<16x128xf32, #tpu.memory_space<vmem>>, %arg5: memref<16x1xf32, #tpu.memory_space<vmem>>, %arg6: memref<1x16x256xf32, #tpu.memory_space<vmem>>) attributes {dimension_semantics = [#tpu.dimension_semantics<parallel>, #tpu.dimension_semantics<parallel>], iteration_bounds = array<i64: 2, 1>, scalar_prefetch = 0 : i64, scratch_operands = 0 : i64, tpu.core_type = #tpu.core_type<tc>, window_params = [{transform_indices = @transform_0, window_bounds = array<i64: 1, 16, 18, 8>}, {transform_indices = @transform_1, window_bounds = array<i64: 1, 8, 18, 8>}, {pipeline_mode = #tpu.pipeline_mode<synchronous>, transform_indices = @transform_2, window_bounds = array<i64: 16, 128>}, {pipeline_mode = #tpu.pipeline_mode<synchronous>, transform_indices = @transform_3, window_bounds = array<i64: 16, 1>}, {transform_indices = @transform_4, window_bounds = array<i64: 1, 16, 256>}]} {
    %c0 = arith.constant 0 : index
    %c0_0 = arith.constant 0 : index
    %c0_1 = arith.constant 0 : index
    %c0_2 = arith.constant 0 : index
    %0 = vector.load %arg2[%c0, %c0_0, %c0_1, %c0_2] : memref<1x16x18x8xf32, #tpu.memory_space<vmem>>, vector<1x16x18x8xf32>
    %1 = vector.shape_cast %0 : vector<1x16x18x8xf32> to vector<16x18x8xf32>
    %c0_3 = arith.constant 0 : index
    %c0_4 = arith.constant 0 : index
    %c0_5 = arith.constant 0 : index
    %c0_6 = arith.constant 0 : index
    %2 = vector.load %arg3[%c0_3, %c0_4, %c0_5, %c0_6] : memref<1x8x18x8xf32, #tpu.memory_space<vmem>>, vector<1x2x18x8xf32>
    %3 = vector.shape_cast %2 : vector<1x2x18x8xf32> to vector<2x18x8xf32>
    %4 = tpu.concatenate %1, %3 in 0 : vector<16x18x8xf32>, vector<2x18x8xf32> -> vector<18x18x8xf32>
    %5 = vector.extract_strided_slice %4 {offsets = [0, 0, 0], sizes = [16, 16, 8], strides = [1, 1, 1]} : vector<18x18x8xf32> to vector<16x16x8xf32>
    %6 = vector.extract_strided_slice %4 {offsets = [0, 1, 0], sizes = [16, 16, 8], strides = [1, 1, 1]} : vector<18x18x8xf32> to vector<16x16x8xf32>
    %7 = vector.extract_strided_slice %4 {offsets = [0, 2, 0], sizes = [16, 16, 8], strides = [1, 1, 1]} : vector<18x18x8xf32> to vector<16x16x8xf32>
    %8 = vector.extract_strided_slice %4 {offsets = [1, 0, 0], sizes = [16, 16, 8], strides = [1, 1, 1]} : vector<18x18x8xf32> to vector<16x16x8xf32>
    %9 = vector.extract_strided_slice %4 {offsets = [1, 1, 0], sizes = [16, 16, 8], strides = [1, 1, 1]} : vector<18x18x8xf32> to vector<16x16x8xf32>
    %10 = vector.extract_strided_slice %4 {offsets = [1, 2, 0], sizes = [16, 16, 8], strides = [1, 1, 1]} : vector<18x18x8xf32> to vector<16x16x8xf32>
    %11 = vector.extract_strided_slice %4 {offsets = [2, 0, 0], sizes = [16, 16, 8], strides = [1, 1, 1]} : vector<18x18x8xf32> to vector<16x16x8xf32>
    %12 = vector.extract_strided_slice %4 {offsets = [2, 1, 0], sizes = [16, 16, 8], strides = [1, 1, 1]} : vector<18x18x8xf32> to vector<16x16x8xf32>
    %13 = vector.extract_strided_slice %4 {offsets = [2, 2, 0], sizes = [16, 16, 8], strides = [1, 1, 1]} : vector<18x18x8xf32> to vector<16x16x8xf32>
    %cst = arith.constant 0.000000e+00 : f32
    %14 = vector.broadcast %cst : f32 to vector<16x16x56xf32>
    %15 = tpu.concatenate %5, %6, %7, %8, %9, %10, %11, %12, %13, %14 in 2 : vector<16x16x8xf32>, vector<16x16x8xf32>, vector<16x16x8xf32>, vector<16x16x8xf32>, vector<16x16x8xf32>, vector<16x16x8xf32>, vector<16x16x8xf32>, vector<16x16x8xf32>, vector<16x16x8xf32>, vector<16x16x56xf32> -> vector<16x16x128xf32>
    %16 = vector.shape_cast %15 : vector<16x16x128xf32> to vector<256x128xf32>
    %c0_7 = arith.constant 0 : index
    %c0_8 = arith.constant 0 : index
    %17 = vector.load %arg4[%c0_7, %c0_8] : memref<16x128xf32, #tpu.memory_space<vmem>>, vector<16x128xf32>
    %cst_9 = arith.constant dense<0.000000e+00> : vector<16x256xf32>
    %18 = tpu.matmul %17, %16, %cst_9 {dimension_numbers = #tpu.dot_dimension_numbers<[1], [1], [0], [0], [0, 0, 1, 0], [], []>} : vector<16x128xf32>, vector<256x128xf32>, vector<16x256xf32> -> vector<16x256xf32>
    %c0_10 = arith.constant 0 : index
    %c0_11 = arith.constant 0 : index
    %19 = vector.load %arg5[%c0_10, %c0_11] : memref<16x1xf32, #tpu.memory_space<vmem>>, vector<16x1xf32>
    %20 = vector.broadcast %19 : vector<16x1xf32> to vector<16x256xf32>
    %21 = arith.addf %18, %20 : vector<16x256xf32>
    %c0_12 = arith.constant 0 : index
    %c0_13 = arith.constant 0 : index
    %c0_14 = arith.constant 0 : index
    %22 = vector.load %arg6[%c0_12, %c0_13, %c0_14] : memref<1x16x256xf32, #tpu.memory_space<vmem>>, vector<1x16x256xf32>
    %23 = vector.shape_cast %22 : vector<1x16x256xf32> to vector<16x256xf32>
    %24 = vector.shape_cast %21 : vector<16x256xf32> to vector<1x16x256xf32>
    tpu.vector_store %arg6[%c0_12, %c0_13, %c0_14], %24 {strides = array<i32>} : memref<1x16x256xf32, #tpu.memory_space<vmem>>, vector<1x16x256xf32>,
    return
  }
  func.func @transform_0(%arg0: i32, %arg1: i32) -> (i32, i32, i32, i32) {
    %c0_i32 = arith.constant 0 : i32
    %c0_i32_0 = arith.constant 0 : i32
    %c0_i32_1 = arith.constant 0 : i32
    return %arg0, %arg1, %c0_i32, %c0_i32_0 : i32, i32, i32, i32
  }
  func.func @transform_1(%arg0: i32, %arg1: i32) -> (i32, i32, i32, i32) {
    %c1_i32 = arith.constant 1 : i32
    %0 = arith.addi %arg1, %c1_i32 : i32
    %c2_i32 = arith.constant 2 : i32
    %1 = arith.muli %0, %c2_i32 : i32
    %c0_i32 = arith.constant 0 : i32
    %c0_i32_0 = arith.constant 0 : i32
    %c0_i32_1 = arith.constant 0 : i32
    return %arg0, %1, %c0_i32, %c0_i32_0 : i32, i32, i32, i32
  }
  func.func @transform_2(%arg0: i32, %arg1: i32) -> (i32, i32) {
    %c0_i32 = arith.constant 0 : i32
    %c0_i32_0 = arith.constant 0 : i32
    %c0_i32_1 = arith.constant 0 : i32
    return %c0_i32, %c0_i32_0 : i32, i32
  }
  func.func @transform_3(%arg0: i32, %arg1: i32) -> (i32, i32) {
    %c0_i32 = arith.constant 0 : i32
    %c0_i32_0 = arith.constant 0 : i32
    %c0_i32_1 = arith.constant 0 : i32
    return %c0_i32, %c0_i32_0 : i32, i32
  }
  func.func @transform_4(%arg0: i32, %arg1: i32) -> (i32, i32, i32) {
    %c0_i32 = arith.constant 0 : i32
    %c0_i32_0 = arith.constant 0 : i32
    return %arg0, %c0_i32, %arg1 : i32, i32, i32
  }
}

</mosaic_0001>

<llo_original>
// kernel: tpu_custom_call.1
$region0: #{tpu_custom_call.1}
  #allocation0 [shape = 'u32[]', space=smem, size = 0x4, offset = 0x4, fixed_abs, tag = 'smem constant byte address 0x4 - core index']
  #allocation1 [shape = 'u32[144,128]{1,0:T(1,128)}', space=vmem, size = 0x12000, scoped, tag = 'internal scratch']
  %s0 = inlined_call_operand.vmem [shape: f32[2,24,18,8], index: 0, kind: input, shape index: {}]
  %s1 = inlined_call_operand.vmem [shape: f32[2,24,18,8], index: 1, kind: input, shape index: {}]
  %s2 = inlined_call_operand.vmem [shape: f32[16,128], index: 2, kind: input, shape index: {}]
  %s3 = inlined_call_operand.vmem [shape: f32[16,1], index: 3, kind: input, shape index: {}]
  %s4 = inlined_call_operand.hbm [shape: f32[2,16,256], index: 4, kind: output, shape index: {}]
  %s5 = sld [smem:[#allocation0]]
  $region49: #{tpu_custom_call.1} parent=0
    _
  %s7 = ssub.s32 1, %s5
  %s8 = scalar_select 0, %s7, %s5
  $region1: #{tpu_custom_call.1} parent=0
    #allocation2 [shape = 'u8[32768]{0}', space=vmem, size = 0x8000, scoped, tag = 'output window, operand 0']
    #allocation3 [shape = 's32[2]{0}', space=sflag, size = 0x8, scoped, tag = 'scoped memory for tpu_custom_call.1']
    %9 = vsyncpa [#allocation3], 0
    %s10 = scalar_lea.sflag [#allocation3], 1
    %11 = vsyncpa %s10, 0
    loop: start=0, step=1, limit=4
    $region2: #{tpu_custom_call.1} parent=1 // loop_pre_header
      _
    $region3: #{tpu_custom_call.1} parent=1 // loop_header
      %s13 = sphi 0, %s17
      %p14 = scmp.ge.s32.totalorder %s13, 4
      %s20 = sphi 0, %s32
      %s21 = sphi 0, %s28
      %s22 = sphi 0, %s20
      %s23 = sphi 0, %s21
      %s24 = sphi 0, %s22
      %s25 = sphi 0, %s23
      %s37 = sphi 0, %s39
      %s40 = sphi 0, %s37
      %s41 = sphi 0, %s40
      %s57 = sphi 0, %s41
      %s69 = sphi 0, %s71
      %s72 = sphi 0, %s69
      %s73 = sphi 0, %s72
      %s89 = sphi 0, %s73
      %s93 = sphi 0, %s93
      %s95 = sphi 0, %s93
      %s96 = sphi 0, %s95
      %s110 = sphi 0, %s96
      %s114 = sphi 0, %s114
      %s116 = sphi 0, %s114
      %s117 = sphi 0, %s116
      %s131 = sphi 0, %s117
      %s139 = sphi 0, %s141
      %s142 = sphi 0, %s139
      %s143 = sphi 0, %s142
      %s159 = sphi 0, %s143
    $region4: #{tpu_custom_call.1} parent=1 // loop_header_branch
      %16 = sbr.rel (%p14) target = $region8
    $region5: #{tpu_custom_call.1} parent=1 // loop_body
      %s18 = ssub.s32 %s13, 1
      %s19 = ssub.s32 %s13, 2
      %s26 = sadd.s32 1, %s21
      %p27 = scmp.ge.s32.totalorder %s26, 1
      %s28 = scalar_select %p27, 0, %s26
      %s29 = sadd.s32 1, %s20
      %s30 = scalar_select %p27, %s29, %s20
      %p31 = scmp.ge.s32.totalorder %s30, 2
      %s32 = scalar_select %p31, 0, %s30
      %s33 = ssub.s32 %s20, %s32
      %s34 = ssub.s32 %s21, %s28
      %s35 = sor.u32 %s33, %s34
      %p36 = scmp.eq.s32.totalorder %s35, 0
      %s38 = sadd.s32 %s37, 1
      %s39 = scalar_select %p36, %s37, %s38
      %p42 = pneg %p36
      %p43 = scmp.eq.s32.totalorder %s13, 1
      %p44 = por %p42, %p43
      %p45 = scmp.ne.s32.totalorder %s37, %s40
      %p46 = scmp.eq.s32.totalorder %s13, 0
      %p47 = por %p45, %p46
      %p48 = scmp.ne.s32.totalorder %s37, %s40
      %p49 = scmp.eq.s32.totalorder %s18, 1
      %p50 = por %p48, %p49
      %p51 = scmp.ne.s32.totalorder %s40, %s41
      %p52 = scmp.eq.s32.totalorder %s18, 0
      %p53 = por %p51, %p52
      %p54 = scmp.ne.s32.totalorder %s40, %s41
      %p55 = scmp.eq.s32.totalorder %s19, 1
      %p56 = por %p54, %p55
      %p58 = scmp.ne.s32.totalorder %s41, %s57
      %p59 = scmp.eq.s32.totalorder %s19, 0
      %p60 = por %p58, %p59
      %s61 = sadd.s32 %s21, 1
      %s62 = smul.u32 %s61, 2
      %s63 = sadd.s32 %s28, 1
      %s64 = smul.u32 %s63, 2
      %s65 = ssub.s32 %s20, %s32
      %s66 = ssub.s32 %s62, %s64
      %s67 = sor.u32 %s65, %s66
      %p68 = scmp.eq.s32.totalorder %s67, 0
      %s70 = sadd.s32 %s69, 1
      %s71 = scalar_select %p68, %s69, %s70
      %p74 = pneg %p68
      %p75 = scmp.eq.s32.totalorder %s13, 1
      %p76 = por %p74, %p75
      %p77 = scmp.ne.s32.totalorder %s69, %s72
      %p78 = scmp.eq.s32.totalorder %s13, 0
      %p79 = por %p77, %p78
      %p80 = scmp.ne.s32.totalorder %s69, %s72
      %p81 = scmp.eq.s32.totalorder %s18, 1
      %p82 = por %p80, %p81
      %p83 = scmp.ne.s32.totalorder %s72, %s73
      %p84 = scmp.eq.s32.totalorder %s18, 0
      %p85 = por %p83, %p84
      %p86 = scmp.ne.s32.totalorder %s72, %s73
      %p87 = scmp.eq.s32.totalorder %s19, 1
      %p88 = por %p86, %p87
      %p90 = scmp.ne.s32.totalorder %s73, %s89
      %p91 = scmp.eq.s32.totalorder %s19, 0
      %p92 = por %p90, %p91
      %s94 = sadd.s32 %s93, 1
      %p97 = scmp.eq.s32.totalorder %s13, 1
      %p98 = scmp.ne.s32.totalorder %s93, %s95
      %p99 = scmp.eq.s32.totalorder %s13, 0
      %p100 = por %p98, %p99
      %p101 = scmp.ne.s32.totalorder %s93, %s95
      %p102 = scmp.eq.s32.totalorder %s18, 1
      %p103 = por %p101, %p102
      %p104 = scmp.ne.s32.totalorder %s95, %s96
      %p105 = scmp.eq.s32.totalorder %s18, 0
      %p106 = por %p104, %p105
      %p107 = scmp.ne.s32.totalorder %s95, %s96
      %p108 = scmp.eq.s32.totalorder %s19, 1
      %p109 = por %p107, %p108
      %p111 = scmp.ne.s32.totalorder %s96, %s110
      %p112 = scmp.eq.s32.totalorder %s19, 0
      %p113 = por %p111, %p112
      %s115 = sadd.s32 %s114, 1
      %p118 = scmp.eq.s32.totalorder %s13, 1
      %p119 = scmp.ne.s32.totalorder %s114, %s116
      %p120 = scmp.eq.s32.totalorder %s13, 0
      %p121 = por %p119, %p120
      %p122 = scmp.ne.s32.totalorder %s114, %s116
      %p123 = scmp.eq.s32.totalorder %s18, 1
      %p124 = por %p122, %p123
      %p125 = scmp.ne.s32.totalorder %s116, %s117
      %p126 = scmp.eq.s32.totalorder %s18, 0
      %p127 = por %p125, %p126
      %p128 = scmp.ne.s32.totalorder %s116, %s117
      %p129 = scmp.eq.s32.totalorder %s19, 1
      %p130 = por %p128, %p129
      %p132 = scmp.ne.s32.totalorder %s117, %s131
      %p133 = scmp.eq.s32.totalorder %s19, 0
      %p134 = por %p132, %p133
      %s135 = ssub.s32 %s20, %s32
      %s136 = ssub.s32 %s21, %s28
      %s137 = sor.u32 %s135, %s136
      %p138 = scmp.eq.s32.totalorder %s137, 0
      %s140 = sadd.s32 %s139, 1
      %s141 = scalar_select %p138, %s139, %s140
      %p144 = pneg %p138
      %p145 = scmp.eq.s32.totalorder %s13, 1
      %p146 = por %p144, %p145
      %p147 = scmp.ne.s32.totalorder %s139, %s142
      %p148 = scmp.eq.s32.totalorder %s13, 0
      %p149 = por %p147, %p148
      %p150 = scmp.ne.s32.totalorder %s139, %s142
      %p151 = scmp.eq.s32.totalorder %s18, 1
      %p152 = por %p150, %p151
      %p153 = scmp.ne.s32.totalorder %s142, %s143
      %p154 = scmp.eq.s32.totalorder %s18, 0
      %p155 = por %p153, %p154
      %p156 = scmp.ne.s32.totalorder %s142, %s143
      %p157 = scmp.eq.s32.totalorder %s19, 1
      %p158 = por %p156, %p157
      %p160 = scmp.ne.s32.totalorder %s143, %s159
      %p161 = scmp.eq.s32.totalorder %s19, 0
      %p162 = por %p160, %p161
      %p163 = scmp.le.s32.totalorder 1, %s13
      %p164 = scmp.lt.s32.totalorder %s13, 3
      %p165 = pnand %p163, %p164
      %p166 = pneg %p165
      // Predicated region
      $region9: #{tpu_custom_call.1} parent=5 // pred_check
        _
      $region10: #{tpu_custom_call.1} parent=5 // pred_check_branch
        %168 = sbr.rel (%p165) target = $region12
      $region11: #{tpu_custom_call.1} parent=5 // pred_region
        %s169 = ssub.s32 %s13, 1
        // Predicated region
        $region13: #{tpu_custom_call.1} parent=11 // pred_check
          %p170 = pneg %p106
        $region14: #{tpu_custom_call.1} parent=11 // pred_check_branch
          %172 = sbr.rel (%p170) target = $region16
        $region15: #{tpu_custom_call.1} parent=11 // pred_region
          _
        $region16: #{tpu_custom_call.1} parent=11 // pred_fallthru
          _
        // Predicated region
        $region17: #{tpu_custom_call.1} parent=11 // pred_check
          %p173 = pneg %p127
        $region18: #{tpu_custom_call.1} parent=11 // pred_check_branch
          %175 = sbr.rel (%p173) target = $region20
        $region19: #{tpu_custom_call.1} parent=11 // pred_region
          _
        $region20: #{tpu_custom_call.1} parent=11 // pred_fallthru
          _
      $region12: #{tpu_custom_call.1} parent=5 // pred_fallthru
        _
      %p176 = scmp.lt.s32.totalorder %s13, 2
      // Predicated region
      $region21: #{tpu_custom_call.1} parent=5 // pred_check
        %p177 = pneg %p176
      $region22: #{tpu_custom_call.1} parent=5 // pred_check_branch
        %179 = sbr.rel (%p177) target = $region24
      $region23: #{tpu_custom_call.1} parent=5 // pred_region
        // Predicated region
        $region25: #{tpu_custom_call.1} parent=23 // pred_check
          %p180 = pneg %p47
        $region26: #{tpu_custom_call.1} parent=23 // pred_check_branch
          %182 = sbr.rel (%p180) target = $region28
        $region27: #{tpu_custom_call.1} parent=23 // pred_region
          %s183 = smul.u32 16, %s21
          %s184 = ssub.s32 24, %s183
          %p185 = scmp.lt.s32.totalorder %s184, 16
          %s186 = scalar_select %p185, %s184, 16
          %s187 = smul.u32 128, %s186
          %s188 = smul.u32 %s187, 3
          %p189 = scmp.lt.s32.totalorder %s20, 1
          %s190 = scalar_select %p189, %s20, 1
          %p191 = scmp.lt.s32.totalorder %s183, 23
          %s192 = scalar_select %p191, %s183, 23
          %s193 = smul.addr %s192, 3
          %s194 = smul.addr %s190, 72
          %s195 = sadd.s32 %s193, %s194
          %s196 = smul.addr %s195, 8
          %s197 = scalar_lea.vmem %s0, %s196
          %s198 = smul.u32 16, %s21
          %s199 = ssub.s32 24, %s198
          %p200 = scmp.lt.s32.totalorder %s199, 16
          %s201 = scalar_select %p200, %s199, 16
          %s202 = smul.u32 128, %s201
          %s203 = smul.u32 %s202, 3
        $region28: #{tpu_custom_call.1} parent=23 // pred_fallthru
          _
        // Predicated region
        $region29: #{tpu_custom_call.1} parent=23 // pred_check
          %p204 = pneg %p79
        $region30: #{tpu_custom_call.1} parent=23 // pred_check_branch
          %206 = sbr.rel (%p204) target = $region32
        $region31: #{tpu_custom_call.1} parent=23 // pred_region
          %s207 = sadd.s32 %s21, 1
          %s208 = smul.u32 %s207, 2
          %s209 = smul.u32 8, %s208
          %p210 = scmp.lt.s32.totalorder %s20, 1
          %s211 = scalar_select %p210, %s20, 1
          %p212 = scmp.lt.s32.totalorder %s209, 23
          %s213 = scalar_select %p212, %s209, 23
          %s214 = smul.addr %s213, 3
          %s215 = smul.addr %s211, 72
          %s216 = sadd.s32 %s214, %s215
          %s217 = smul.addr %s216, 8
          %s218 = scalar_lea.vmem %s1, %s217
          %s219 = sadd.s32 %s21, 1
          %s220 = smul.u32 %s219, 2
          %s221 = smul.u32 8, %s220
        $region32: #{tpu_custom_call.1} parent=23 // pred_fallthru
          _
      $region24: #{tpu_custom_call.1} parent=5 // pred_fallthru
        _
      %p222 = scmp.le.s32.totalorder 1, %s13
      %p223 = scmp.lt.s32.totalorder %s13, 3
      %p224 = pnand %p222, %p223
      %p225 = pneg %p224
      // Predicated region
      $region33: #{tpu_custom_call.1} parent=5 // pred_check
        _
      $region34: #{tpu_custom_call.1} parent=5 // pred_check_branch
        %227 = sbr.rel (%p224) target = $region36
      $region35: #{tpu_custom_call.1} parent=5 // pred_region
        %s228 = ssub.s32 %s13, 1
        %s229 = smul.u32 16, %s23
        %s230 = ssub.s32 24, %s229
        %p231 = scmp.lt.s32.totalorder %s230, 16
        %s232 = scalar_select %p231, %s230, 16
        %s233 = smul.u32 128, %s232
        %s234 = smul.u32 %s233, 3
        %p235 = scmp.lt.s32.totalorder %s22, 1
        %s236 = scalar_select %p235, %s22, 1
        %p237 = scmp.lt.s32.totalorder %s229, 23
        %s238 = scalar_select %p237, %s229, 23
        %s239 = smul.addr %s238, 3
        %s240 = smul.addr %s236, 72
        %s241 = sadd.s32 %s239, %s240
        %s242 = smul.addr %s241, 8
        %s243 = scalar_lea.vmem %s0, %s242
        %p244 = pneg %p53
        %p245 = pneg %p50
        %s246 = sadd.s32 %s23, 1
        %s247 = smul.u32 %s246, 2
        %s248 = smul.u32 8, %s247
        %p249 = scmp.lt.s32.totalorder %s22, 1
        %s250 = scalar_select %p249, %s22, 1
        %p251 = scmp.lt.s32.totalorder %s248, 23
        %s252 = scalar_select %p251, %s248, 23
        %s253 = smul.addr %s252, 3
        %s254 = smul.addr %s250, 72
        %s255 = sadd.s32 %s253, %s254
        %s256 = smul.addr %s255, 8
        %s257 = scalar_lea.vmem %s1, %s256
        %p258 = pneg %p85
        %p259 = pneg %p82
        %p260 = pneg %p106
        %p261 = pneg %p103
        %p262 = pneg %p127
        %p263 = pneg %p124
        %p264 = pneg %p155
        %p265 = pneg %p152
        %s266 = sand.u32 %s142, 1
        %s267 = scalar_lea.sflag [#allocation3], %s266
        %s268 = sand.u32 %s142, 1
        %s269 = smul.addr %s268, 32
        %s270 = scalar_lea.vmem [#allocation2], %s269
        %s271 = smul.u32 16, %s23
        %s272 = ssub.s32 24, %s271
        %p273 = scmp.lt.s32.totalorder %s272, 16
        %s274 = scalar_select %p273, %s272, 16
        %s275 = smul.u32 128, %s274
        %s276 = smul.u32 %s275, 3
        %p277 = scmp.lt.s32.totalorder %s22, 1
        %s278 = scalar_select %p277, %s22, 1
        %p279 = scmp.lt.s32.totalorder %s271, 23
        %s280 = scalar_select %p279, %s271, 23
        %s281 = smul.addr %s280, 3
        %s282 = smul.addr %s278, 72
        %s283 = sadd.s32 %s281, %s282
        %s284 = smul.addr %s283, 8
        %s285 = scalar_lea.vmem %s0, %s284
        %s286 = smul.u32 16, %s23
        %s287 = ssub.s32 24, %s286
        %p288 = scmp.lt.s32.totalorder %s287, 16
        %s289 = scalar_select %p288, %s287, 16
        %s290 = smul.u32 128, %s289
        %s291 = smul.u32 %s290, 3
        %s292 = sadd.s32 %s23, 1
        %s293 = smul.u32 %s292, 2
        %s294 = smul.u32 8, %s293
        %p295 = scmp.lt.s32.totalorder %s22, 1
        %s296 = scalar_select %p295, %s22, 1
        %p297 = scmp.lt.s32.totalorder %s294, 23
        %s298 = scalar_select %p297, %s294, 23
        %s299 = smul.addr %s298, 3
        %s300 = smul.addr %s296, 72
        %s301 = sadd.s32 %s299, %s300
        %s302 = smul.addr %s301, 8
        %s303 = scalar_lea.vmem %s1, %s302
        %s304 = sadd.s32 %s23, 1
        %s305 = smul.u32 %s304, 2
        %s306 = smul.u32 8, %s305
        %s307 = smul.u32 2, %s23
        %v308 = vld [vmem:[%s285] sm:$0xff]
        %v309 = vld [vmem:[%s285 + $0x8] sm:$0xff]
        %v310 = vld [vmem:[%s285 + $0x10] sm:$0x3]
        %v311 = vld [vmem:[%s285 + $0x18] sm:$0xff]
        %v312 = vld [vmem:[%s285 + $0x20] sm:$0xff]
        %v313 = vld [vmem:[%s285 + $0x28] sm:$0x3]
        %v314 = vld [vmem:[%s285 + $0x30] sm:$0xff]
        %v315 = vld [vmem:[%s285 + $0x38] sm:$0xff]
        %v316 = vld [vmem:[%s285 + $0x40] sm:$0x3]
        %v317 = vld [vmem:[%s285 + $0x48] sm:$0xff]
        %v318 = vld [vmem:[%s285 + $0x50] sm:$0xff]
        %v319 = vld [vmem:[%s285 + $0x58] sm:$0x3]
        %v320 = vld [vmem:[%s285 + $0x60] sm:$0xff]
        %v321 = vld [vmem:[%s285 + $0x68] sm:$0xff]
        %v322 = vld [vmem:[%s285 + $0x70] sm:$0x3]
        %v323 = vld [vmem:[%s285 + $0x78] sm:$0xff]
        %v324 = vld [vmem:[%s285 + $0x80] sm:$0xff]
        %v325 = vld [vmem:[%s285 + $0x88] sm:$0x3]
        %v326 = vld [vmem:[%s285 + $0x90] sm:$0xff]
        %v327 = vld [vmem:[%s285 + $0x98] sm:$0xff]
        %v328 = vld [vmem:[%s285 + $0xa0] sm:$0x3]
        %v329 = vld [vmem:[%s285 + $0xa8] sm:$0xff]
        %v330 = vld [vmem:[%s285 + $0xb0] sm:$0xff]
        %v331 = vld [vmem:[%s285 + $0xb8] sm:$0x3]
        %v332 = vld [vmem:[%s285 + $0xc0] sm:$0xff]
        %v333 = vld [vmem:[%s285 + $0xc8] sm:$0xff]
        %v334 = vld [vmem:[%s285 + $0xd0] sm:$0x3]
        %v335 = vld [vmem:[%s285 + $0xd8] sm:$0xff]
        %v336 = vld [vmem:[%s285 + $0xe0] sm:$0xff]
        %v337 = vld [vmem:[%s285 + $0xe8] sm:$0x3]
        %v338 = vld [vmem:[%s285 + $0xf0] sm:$0xff]
        %v339 = vld [vmem:[%s285 + $0xf8] sm:$0xff]
        %v340 = vld [vmem:[%s285 + $0x100] sm:$0x3]
        %v341 = vld [vmem:[%s285 + $0x108] sm:$0xff]
        %v342 = vld [vmem:[%s285 + $0x110] sm:$0xff]
        %v343 = vld [vmem:[%s285 + $0x118] sm:$0x3]
        %v344 = vld [vmem:[%s285 + $0x120] sm:$0xff]
        %v345 = vld [vmem:[%s285 + $0x128] sm:$0xff]
        %v346 = vld [vmem:[%s285 + $0x130] sm:$0x3]
        %v347 = vld [vmem:[%s285 + $0x138] sm:$0xff]
        %v348 = vld [vmem:[%s285 + $0x140] sm:$0xff]
        %v349 = vld [vmem:[%s285 + $0x148] sm:$0x3]
        %v350 = vld [vmem:[%s285 + $0x150] sm:$0xff]
        %v351 = vld [vmem:[%s285 + $0x158] sm:$0xff]
        %v352 = vld [vmem:[%s285 + $0x160] sm:$0x3]
        %v353 = vld [vmem:[%s285 + $0x168] sm:$0xff]
        %v354 = vld [vmem:[%s285 + $0x170] sm:$0xff]
        %v355 = vld [vmem:[%s285 + $0x178] sm:$0x3]
        %v356 = vld [vmem:[%s303] sm:$0xff]
        %v357 = vld [vmem:[%s303 + $0x8] sm:$0xff]
        %v358 = vld [vmem:[%s303 + $0x10] sm:$0x3]
        %v359 = vld [vmem:[%s303 + $0x18] sm:$0xff]
        %v360 = vld [vmem:[%s303 + $0x20] sm:$0xff]
        %v361 = vld [vmem:[%s303 + $0x28] sm:$0x3]
        %vm410 = vcmask 1046528
        %v411 = vrot.slane %v308, 1
        %v412 = vrot.slane %v309, 1
        %v413 = vsel %vm410, %v411, %v412
        %v414 = vrot.slane %v310, 1
        %v415 = vsel %vm410, %v412, %v414
        %v416 = vrot.slane %v311, 1
        %v417 = vrot.slane %v312, 1
        %v418 = vsel %vm410, %v416, %v417
        %v419 = vrot.slane %v313, 1
        %v420 = vsel %vm410, %v417, %v419
        %v421 = vrot.slane %v314, 1
        %v422 = vrot.slane %v315, 1
        %v423 = vsel %vm410, %v421, %v422
        %v424 = vrot.slane %v316, 1
        %v425 = vsel %vm410, %v422, %v424
        %v426 = vrot.slane %v317, 1
        %v427 = vrot.slane %v318, 1
        %v428 = vsel %vm410, %v426, %v427
        %v429 = vrot.slane %v319, 1
        %v430 = vsel %vm410, %v427, %v429
        %v431 = vrot.slane %v320, 1
        %v432 = vrot.slane %v321, 1
        %v433 = vsel %vm410, %v431, %v432
        %v434 = vrot.slane %v322, 1
        %v435 = vsel %vm410, %v432, %v434
        %v436 = vrot.slane %v323, 1
        %v437 = vrot.slane %v324, 1
        %v438 = vsel %vm410, %v436, %v437
        %v439 = vrot.slane %v325, 1
        %v440 = vsel %vm410, %v437, %v439
        %v441 = vrot.slane %v326, 1
        %v442 = vrot.slane %v327, 1
        %v443 = vsel %vm410, %v441, %v442
        %v444 = vrot.slane %v328, 1
        %v445 = vsel %vm410, %v442, %v444
        %v446 = vrot.slane %v329, 1
        %v447 = vrot.slane %v330, 1
        %v448 = vsel %vm410, %v446, %v447
        %v449 = vrot.slane %v331, 1
        %v450 = vsel %vm410, %v447, %v449
        %v451 = vrot.slane %v332, 1
        %v452 = vrot.slane %v333, 1
        %v453 = vsel %vm410, %v451, %v452
        %v454 = vrot.slane %v334, 1
        %v455 = vsel %vm410, %v452, %v454
        %v456 = vrot.slane %v335, 1
        %v457 = vrot.slane %v336, 1
        %v458 = vsel %vm410, %v456, %v457
        %v459 = vrot.slane %v337, 1
        %v460 = vsel %vm410, %v457, %v459
        %v461 = vrot.slane %v338, 1
        %v462 = vrot.slane %v339, 1
        %v463 = vsel %vm410, %v461, %v462
        %v464 = vrot.slane %v340, 1
        %v465 = vsel %vm410, %v462, %v464
        %v466 = vrot.slane %v341, 1
        %v467 = vrot.slane %v342, 1
        %v468 = vsel %vm410, %v466, %v467
        %v469 = vrot.slane %v343, 1
        %v470 = vsel %vm410, %v467, %v469
        %v471 = vrot.slane %v344, 1
        %v472 = vrot.slane %v345, 1
        %v473 = vsel %vm410, %v471, %v472
        %v474 = vrot.slane %v346, 1
        %v475 = vsel %vm410, %v472, %v474
        %v476 = vrot.slane %v347, 1
        %v477 = vrot.slane %v348, 1
        %v478 = vsel %vm410, %v476, %v477
        %v479 = vrot.slane %v349, 1
        %v480 = vsel %vm410, %v477, %v479
        %v481 = vrot.slane %v350, 1
        %v482 = vrot.slane %v351, 1
        %v483 = vsel %vm410, %v481, %v482
        %v484 = vrot.slane %v352, 1
        %v485 = vsel %vm410, %v482, %v484
        %v486 = vrot.slane %v353, 1
        %v487 = vrot.slane %v354, 1
        %v488 = vsel %vm410, %v486, %v487
        %v489 = vrot.slane %v355, 1
        %v490 = vsel %vm410, %v487, %v489
        %491 = vrot.lane.b32.xlu0 %v413, 8
        %v492 = vpop.permute.xlu0 %491
        %493 = vrot.lane.b32.xlu0 %v415, 8
        %v494 = vpop.permute.xlu0 %493
        %495 = vrot.lane.b32.xlu0 %v418, 8
        %v496 = vpop.permute.xlu0 %495
        %497 = vrot.lane.b32.xlu0 %v420, 8
        %v498 = vpop.permute.xlu0 %497
        %499 = vrot.lane.b32.xlu0 %v423, 8
        %v500 = vpop.permute.xlu0 %499
        %501 = vrot.lane.b32.xlu0 %v425, 8
        %v502 = vpop.permute.xlu0 %501
        %503 = vrot.lane.b32.xlu0 %v428, 8
        %v504 = vpop.permute.xlu0 %503
        %505 = vrot.lane.b32.xlu0 %v430, 8
        %v506 = vpop.permute.xlu0 %505
        %507 = vrot.lane.b32.xlu0 %v433, 8
        %v508 = vpop.permute.xlu0 %507
        %509 = vrot.lane.b32.xlu0 %v435, 8
        %v510 = vpop.permute.xlu0 %509
        %511 = vrot.lane.b32.xlu0 %v438, 8
        %v512 = vpop.permute.xlu0 %511
        %513 = vrot.lane.b32.xlu0 %v440, 8
        %v514 = vpop.permute.xlu0 %513
        %515 = vrot.lane.b32.xlu0 %v443, 8
        %v516 = vpop.permute.xlu0 %515
        %517 = vrot.lane.b32.xlu0 %v445, 8
        %v518 = vpop.permute.xlu0 %517
        %519 = vrot.lane.b32.xlu0 %v448, 8
        %v520 = vpop.permute.xlu0 %519
        %521 = vrot.lane.b32.xlu0 %v450, 8
        %v522 = vpop.permute.xlu0 %521
        %523 = vrot.lane.b32.xlu0 %v453, 8
        %v524 = vpop.permute.xlu0 %523
        %525 = vrot.lane.b32.xlu0 %v455, 8
        %v526 = vpop.permute.xlu0 %525
        %527 = vrot.lane.b32.xlu0 %v458, 8
        %v528 = vpop.permute.xlu0 %527
        %529 = vrot.lane.b32.xlu0 %v460, 8
        %v530 = vpop.permute.xlu0 %529
        %531 = vrot.lane.b32.xlu0 %v463, 8
        %v532 = vpop.permute.xlu0 %531
        %533 = vrot.lane.b32.xlu0 %v465, 8
        %v534 = vpop.permute.xlu0 %533
        %535 = vrot.lane.b32.xlu0 %v468, 8
        %v536 = vpop.permute.xlu0 %535
        %537 = vrot.lane.b32.xlu0 %v470, 8
        %v538 = vpop.permute.xlu0 %537
        %539 = vrot.lane.b32.xlu0 %v473, 8
        %v540 = vpop.permute.xlu0 %539
        %541 = vrot.lane.b32.xlu0 %v475, 8
        %v542 = vpop.permute.xlu0 %541
        %543 = vrot.lane.b32.xlu0 %v478, 8
        %v544 = vpop.permute.xlu0 %543
        %545 = vrot.lane.b32.xlu0 %v480, 8
        %v546 = vpop.permute.xlu0 %545
        %547 = vrot.lane.b32.xlu0 %v483, 8
        %v548 = vpop.permute.xlu0 %547
        %549 = vrot.lane.b32.xlu0 %v485, 8
        %v550 = vpop.permute.xlu0 %549
        %551 = vrot.lane.b32.xlu0 %v488, 8
        %v552 = vpop.permute.xlu0 %551
        %553 = vrot.lane.b32.xlu0 %v490, 8
        %v554 = vpop.permute.xlu0 %553
        %vm587 = vcmask 1045504
        %v588 = vrot.slane %v308, 2
        %v589 = vrot.slane %v309, 2
        %v590 = vsel %vm587, %v588, %v589
        %v591 = vrot.slane %v310, 2
        %v592 = vsel %vm587, %v589, %v591
        %v593 = vrot.slane %v311, 2
        %v594 = vrot.slane %v312, 2
        %v595 = vsel %vm587, %v593, %v594
        %v596 = vrot.slane %v313, 2
        %v597 = vsel %vm587, %v594, %v596
        %v598 = vrot.slane %v314, 2
        %v599 = vrot.slane %v315, 2
        %v600 = vsel %vm587, %v598, %v599
        %v601 = vrot.slane %v316, 2
        %v602 = vsel %vm587, %v599, %v601
        %v603 = vrot.slane %v317, 2
        %v604 = vrot.slane %v318, 2
        %v605 = vsel %vm587, %v603, %v604
        %v606 = vrot.slane %v319, 2
        %v607 = vsel %vm587, %v604, %v606
        %v608 = vrot.slane %v320, 2
        %v609 = vrot.slane %v321, 2
        %v610 = vsel %vm587, %v608, %v609
        %v611 = vrot.slane %v322, 2
        %v612 = vsel %vm587, %v609, %v611
        %v613 = vrot.slane %v323, 2
        %v614 = vrot.slane %v324, 2
        %v615 = vsel %vm587, %v613, %v614
        %v616 = vrot.slane %v325, 2
        %v617 = vsel %vm587, %v614, %v616
        %v618 = vrot.slane %v326, 2
        %v619 = vrot.slane %v327, 2
        %v620 = vsel %vm587, %v618, %v619
        %v621 = vrot.slane %v328, 2
        %v622 = vsel %vm587, %v619, %v621
        %v623 = vrot.slane %v329, 2
        %v624 = vrot.slane %v330, 2
        %v625 = vsel %vm587, %v623, %v624
        %v626 = vrot.slane %v331, 2
        %v627 = vsel %vm587, %v624, %v626
        %v628 = vrot.slane %v332, 2
        %v629 = vrot.slane %v333, 2
        %v630 = vsel %vm587, %v628, %v629
        %v631 = vrot.slane %v334, 2
        %v632 = vsel %vm587, %v629, %v631
        %v633 = vrot.slane %v335, 2
        %v634 = vrot.slane %v336, 2
        %v635 = vsel %vm587, %v633, %v634
        %v636 = vrot.slane %v337, 2
        %v637 = vsel %vm587, %v634, %v636
        %v638 = vrot.slane %v338, 2
        %v639 = vrot.slane %v339, 2
        %v640 = vsel %vm587, %v638, %v639
        %v641 = vrot.slane %v340, 2
        %v642 = vsel %vm587, %v639, %v641
        %v643 = vrot.slane %v341, 2
        %v644 = vrot.slane %v342, 2
        %v645 = vsel %vm587, %v643, %v644
        %v646 = vrot.slane %v343, 2
        %v647 = vsel %vm587, %v644, %v646
        %v648 = vrot.slane %v344, 2
        %v649 = vrot.slane %v345, 2
        %v650 = vsel %vm587, %v648, %v649
        %v651 = vrot.slane %v346, 2
        %v652 = vsel %vm587, %v649, %v651
        %v653 = vrot.slane %v347, 2
        %v654 = vrot.slane %v348, 2
        %v655 = vsel %vm587, %v653, %v654
        %v656 = vrot.slane %v349, 2
        %v657 = vsel %vm587, %v654, %v656
        %v658 = vrot.slane %v350, 2
        %v659 = vrot.slane %v351, 2
        %v660 = vsel %vm587, %v658, %v659
        %v661 = vrot.slane %v352, 2
        %v662 = vsel %vm587, %v659, %v661
        %v663 = vrot.slane %v353, 2
        %v664 = vrot.slane %v354, 2
        %v665 = vsel %vm587, %v663, %v664
        %v666 = vrot.slane %v355, 2
        %v667 = vsel %vm587, %v664, %v666
        %668 = vrot.lane.b32.xlu0 %v590, 16
        %v669 = vpop.permute.xlu0 %668
        %670 = vrot.lane.b32.xlu0 %v592, 16
        %v671 = vpop.permute.xlu0 %670
        %672 = vrot.lane.b32.xlu0 %v595, 16
        %v673 = vpop.permute.xlu0 %672
        %674 = vrot.lane.b32.xlu0 %v597, 16
        %v675 = vpop.permute.xlu0 %674
        %676 = vrot.lane.b32.xlu0 %v600, 16
        %v677 = vpop.permute.xlu0 %676
        %678 = vrot.lane.b32.xlu0 %v602, 16
        %v679 = vpop.permute.xlu0 %678
        %680 = vrot.lane.b32.xlu0 %v605, 16
        %v681 = vpop.permute.xlu0 %680
        %682 = vrot.lane.b32.xlu0 %v607, 16
        %v683 = vpop.permute.xlu0 %682
        %684 = vrot.lane.b32.xlu0 %v610, 16
        %v685 = vpop.permute.xlu0 %684
        %686 = vrot.lane.b32.xlu0 %v612, 16
        %v687 = vpop.permute.xlu0 %686
        %688 = vrot.lane.b32.xlu0 %v615, 16
        %v689 = vpop.permute.xlu0 %688
        %690 = vrot.lane.b32.xlu0 %v617, 16
        %v691 = vpop.permute.xlu0 %690
        %692 = vrot.lane.b32.xlu0 %v620, 16
        %v693 = vpop.permute.xlu0 %692
        %694 = vrot.lane.b32.xlu0 %v622, 16
        %v695 = vpop.permute.xlu0 %694
        %696 = vrot.lane.b32.xlu0 %v625, 16
        %v697 = vpop.permute.xlu0 %696
        %698 = vrot.lane.b32.xlu0 %v627, 16
        %v699 = vpop.permute.xlu0 %698
        %700 = vrot.lane.b32.xlu0 %v630, 16
        %v701 = vpop.permute.xlu0 %700
        %702 = vrot.lane.b32.xlu0 %v632, 16
        %v703 = vpop.permute.xlu0 %702
        %704 = vrot.lane.b32.xlu0 %v635, 16
        %v705 = vpop.permute.xlu0 %704
        %706 = vrot.lane.b32.xlu0 %v637, 16
        %v707 = vpop.permute.xlu0 %706
        %708 = vrot.lane.b32.xlu0 %v640, 16
        %v709 = vpop.permute.xlu0 %708
        %710 = vrot.lane.b32.xlu0 %v642, 16
        %v711 = vpop.permute.xlu0 %710
        %712 = vrot.lane.b32.xlu0 %v645, 16
        %v713 = vpop.permute.xlu0 %712
        %714 = vrot.lane.b32.xlu0 %v647, 16
        %v715 = vpop.permute.xlu0 %714
        %716 = vrot.lane.b32.xlu0 %v650, 16
        %v717 = vpop.permute.xlu0 %716
        %718 = vrot.lane.b32.xlu0 %v652, 16
        %v719 = vpop.permute.xlu0 %718
        %720 = vrot.lane.b32.xlu0 %v655, 16
        %v721 = vpop.permute.xlu0 %720
        %722 = vrot.lane.b32.xlu0 %v657, 16
        %v723 = vpop.permute.xlu0 %722
        %724 = vrot.lane.b32.xlu0 %v660, 16
        %v725 = vpop.permute.xlu0 %724
        %726 = vrot.lane.b32.xlu0 %v662, 16
        %v727 = vpop.permute.xlu0 %726
        %728 = vrot.lane.b32.xlu0 %v665, 16
        %v729 = vpop.permute.xlu0 %728
        %730 = vrot.lane.b32.xlu0 %v667, 16
        %v731 = vpop.permute.xlu0 %730
        %766 = vrot.lane.b32.xlu0 %v311, 24
        %v767 = vpop.permute.xlu0 %766
        %768 = vrot.lane.b32.xlu0 %v312, 24
        %v769 = vpop.permute.xlu0 %768
        %770 = vrot.lane.b32.xlu0 %v314, 24
        %v771 = vpop.permute.xlu0 %770
        %772 = vrot.lane.b32.xlu0 %v315, 24
        %v773 = vpop.permute.xlu0 %772
        %774 = vrot.lane.b32.xlu0 %v317, 24
        %v775 = vpop.permute.xlu0 %774
        %776 = vrot.lane.b32.xlu0 %v318, 24
        %v777 = vpop.permute.xlu0 %776
        %778 = vrot.lane.b32.xlu0 %v320, 24
        %v779 = vpop.permute.xlu0 %778
        %780 = vrot.lane.b32.xlu0 %v321, 24
        %v781 = vpop.permute.xlu0 %780
        %782 = vrot.lane.b32.xlu0 %v323, 24
        %v783 = vpop.permute.xlu0 %782
        %784 = vrot.lane.b32.xlu0 %v324, 24
        %v785 = vpop.permute.xlu0 %784
        %786 = vrot.lane.b32.xlu0 %v326, 24
        %v787 = vpop.permute.xlu0 %786
        %788 = vrot.lane.b32.xlu0 %v327, 24
        %v789 = vpop.permute.xlu0 %788
        %790 = vrot.lane.b32.xlu0 %v329, 24
        %v791 = vpop.permute.xlu0 %790
        %792 = vrot.lane.b32.xlu0 %v330, 24
        %v793 = vpop.permute.xlu0 %792
        %794 = vrot.lane.b32.xlu0 %v332, 24
        %v795 = vpop.permute.xlu0 %794
        %796 = vrot.lane.b32.xlu0 %v333, 24
        %v797 = vpop.permute.xlu0 %796
        %798 = vrot.lane.b32.xlu0 %v335, 24
        %v799 = vpop.permute.xlu0 %798
        %800 = vrot.lane.b32.xlu0 %v336, 24
        %v801 = vpop.permute.xlu0 %800
        %802 = vrot.lane.b32.xlu0 %v338, 24
        %v803 = vpop.permute.xlu0 %802
        %804 = vrot.lane.b32.xlu0 %v339, 24
        %v805 = vpop.permute.xlu0 %804
        %806 = vrot.lane.b32.xlu0 %v341, 24
        %v807 = vpop.permute.xlu0 %806
        %808 = vrot.lane.b32.xlu0 %v342, 24
        %v809 = vpop.permute.xlu0 %808
        %810 = vrot.lane.b32.xlu0 %v344, 24
        %v811 = vpop.permute.xlu0 %810
        %812 = vrot.lane.b32.xlu0 %v345, 24
        %v813 = vpop.permute.xlu0 %812
        %814 = vrot.lane.b32.xlu0 %v347, 24
        %v815 = vpop.permute.xlu0 %814
        %816 = vrot.lane.b32.xlu0 %v348, 24
        %v817 = vpop.permute.xlu0 %816
        %818 = vrot.lane.b32.xlu0 %v350, 24
        %v819 = vpop.permute.xlu0 %818
        %820 = vrot.lane.b32.xlu0 %v351, 24
        %v821 = vpop.permute.xlu0 %820
        %822 = vrot.lane.b32.xlu0 %v353, 24
        %v823 = vpop.permute.xlu0 %822
        %824 = vrot.lane.b32.xlu0 %v354, 24
        %v825 = vpop.permute.xlu0 %824
        %826 = vrot.lane.b32.xlu0 %v356, 24
        %v827 = vpop.permute.xlu0 %826
        %828 = vrot.lane.b32.xlu0 %v357, 24
        %v829 = vpop.permute.xlu0 %828
        %v863 = vrot.slane %v356, 1
        %v864 = vrot.slane %v357, 1
        %v865 = vsel %vm410, %v863, %v864
        %v866 = vrot.slane %v358, 1
        %v867 = vsel %vm410, %v864, %v866
        %868 = vrot.lane.b32.xlu0 %v418, 32
        %v869 = vpop.permute.xlu0 %868
        %870 = vrot.lane.b32.xlu0 %v420, 32
        %v871 = vpop.permute.xlu0 %870
        %872 = vrot.lane.b32.xlu0 %v423, 32
        %v873 = vpop.permute.xlu0 %872
        %874 = vrot.lane.b32.xlu0 %v425, 32
        %v875 = vpop.permute.xlu0 %874
        %876 = vrot.lane.b32.xlu0 %v428, 32
        %v877 = vpop.permute.xlu0 %876
        %878 = vrot.lane.b32.xlu0 %v430, 32
        %v879 = vpop.permute.xlu0 %878
        %880 = vrot.lane.b32.xlu0 %v433, 32
        %v881 = vpop.permute.xlu0 %880
        %882 = vrot.lane.b32.xlu0 %v435, 32
        %v883 = vpop.permute.xlu0 %882
        %884 = vrot.lane.b32.xlu0 %v438, 32
        %v885 = vpop.permute.xlu0 %884
        %886 = vrot.lane.b32.xlu0 %v440, 32
        %v887 = vpop.permute.xlu0 %886
        %888 = vrot.lane.b32.xlu0 %v443, 32
        %v889 = vpop.permute.xlu0 %888
        %890 = vrot.lane.b32.xlu0 %v445, 32
        %v891 = vpop.permute.xlu0 %890
        %892 = vrot.lane.b32.xlu0 %v448, 32
        %v893 = vpop.permute.xlu0 %892
        %894 = vrot.lane.b32.xlu0 %v450, 32
        %v895 = vpop.permute.xlu0 %894
        %896 = vrot.lane.b32.xlu0 %v453, 32
        %v897 = vpop.permute.xlu0 %896
        %898 = vrot.lane.b32.xlu0 %v455, 32
        %v899 = vpop.permute.xlu0 %898
        %900 = vrot.lane.b32.xlu0 %v458, 32
        %v901 = vpop.permute.xlu0 %900
        %902 = vrot.lane.b32.xlu0 %v460, 32
        %v903 = vpop.permute.xlu0 %902
        %904 = vrot.lane.b32.xlu0 %v463, 32
        %v905 = vpop.permute.xlu0 %904
        %906 = vrot.lane.b32.xlu0 %v465, 32
        %v907 = vpop.permute.xlu0 %906
        %908 = vrot.lane.b32.xlu0 %v468, 32
        %v909 = vpop.permute.xlu0 %908
        %910 = vrot.lane.b32.xlu0 %v470, 32
        %v911 = vpop.permute.xlu0 %910
        %912 = vrot.lane.b32.xlu0 %v473, 32
        %v913 = vpop.permute.xlu0 %912
        %914 = vrot.lane.b32.xlu0 %v475, 32
        %v915 = vpop.permute.xlu0 %914
        %916 = vrot.lane.b32.xlu0 %v478, 32
        %v917 = vpop.permute.xlu0 %916
        %918 = vrot.lane.b32.xlu0 %v480, 32
        %v919 = vpop.permute.xlu0 %918
        %920 = vrot.lane.b32.xlu0 %v483, 32
        %v921 = vpop.permute.xlu0 %920
        %922 = vrot.lane.b32.xlu0 %v485, 32
        %v923 = vpop.permute.xlu0 %922
        %924 = vrot.lane.b32.xlu0 %v488, 32
        %v925 = vpop.permute.xlu0 %924
        %926 = vrot.lane.b32.xlu0 %v490, 32
        %v927 = vpop.permute.xlu0 %926
        %928 = vrot.lane.b32.xlu0 %v865, 32
        %v929 = vpop.permute.xlu0 %928
        %930 = vrot.lane.b32.xlu0 %v867, 32
        %v931 = vpop.permute.xlu0 %930
        %v964 = vrot.slane %v356, 2
        %v965 = vrot.slane %v357, 2
        %v966 = vsel %vm587, %v964, %v965
        %v967 = vrot.slane %v358, 2
        %v968 = vsel %vm587, %v965, %v967
        %969 = vrot.lane.b32.xlu0 %v595, 40
        %v970 = vpop.permute.xlu0 %969
        %971 = vrot.lane.b32.xlu0 %v597, 40
        %v972 = vpop.permute.xlu0 %971
        %973 = vrot.lane.b32.xlu0 %v600, 40
        %v974 = vpop.permute.xlu0 %973
        %975 = vrot.lane.b32.xlu0 %v602, 40
        %v976 = vpop.permute.xlu0 %975
        %977 = vrot.lane.b32.xlu0 %v605, 40
        %v978 = vpop.permute.xlu0 %977
        %979 = vrot.lane.b32.xlu0 %v607, 40
        %v980 = vpop.permute.xlu0 %979
        %981 = vrot.lane.b32.xlu0 %v610, 40
        %v982 = vpop.permute.xlu0 %981
        %983 = vrot.lane.b32.xlu0 %v612, 40
        %v984 = vpop.permute.xlu0 %983
        %985 = vrot.lane.b32.xlu0 %v615, 40
        %v986 = vpop.permute.xlu0 %985
        %987 = vrot.lane.b32.xlu0 %v617, 40
        %v988 = vpop.permute.xlu0 %987
        %989 = vrot.lane.b32.xlu0 %v620, 40
        %v990 = vpop.permute.xlu0 %989
        %991 = vrot.lane.b32.xlu0 %v622, 40
        %v992 = vpop.permute.xlu0 %991
        %993 = vrot.lane.b32.xlu0 %v625, 40
        %v994 = vpop.permute.xlu0 %993
        %995 = vrot.lane.b32.xlu0 %v627, 40
        %v996 = vpop.permute.xlu0 %995
        %997 = vrot.lane.b32.xlu0 %v630, 40
        %v998 = vpop.permute.xlu0 %997
        %999 = vrot.lane.b32.xlu0 %v632, 40
        %v1000 = vpop.permute.xlu0 %999
        %1001 = vrot.lane.b32.xlu0 %v635, 40
        %v1002 = vpop.permute.xlu0 %1001
        %1003 = vrot.lane.b32.xlu0 %v637, 40
        %v1004 = vpop.permute.xlu0 %1003
        %1005 = vrot.lane.b32.xlu0 %v640, 40
        %v1006 = vpop.permute.xlu0 %1005
        %1007 = vrot.lane.b32.xlu0 %v642, 40
        %v1008 = vpop.permute.xlu0 %1007
        %1009 = vrot.lane.b32.xlu0 %v645, 40
        %v1010 = vpop.permute.xlu0 %1009
        %1011 = vrot.lane.b32.xlu0 %v647, 40
        %v1012 = vpop.permute.xlu0 %1011
        %1013 = vrot.lane.b32.xlu0 %v650, 40
        %v1014 = vpop.permute.xlu0 %1013
        %1015 = vrot.lane.b32.xlu0 %v652, 40
        %v1016 = vpop.permute.xlu0 %1015
        %1017 = vrot.lane.b32.xlu0 %v655, 40
        %v1018 = vpop.permute.xlu0 %1017
        %1019 = vrot.lane.b32.xlu0 %v657, 40
        %v1020 = vpop.permute.xlu0 %1019
        %1021 = vrot.lane.b32.xlu0 %v660, 40
        %v1022 = vpop.permute.xlu0 %1021
        %1023 = vrot.lane.b32.xlu0 %v662, 40
        %v1024 = vpop.permute.xlu0 %1023
        %1025 = vrot.lane.b32.xlu0 %v665, 40
        %v1026 = vpop.permute.xlu0 %1025
        %1027 = vrot.lane.b32.xlu0 %v667, 40
        %v1028 = vpop.permute.xlu0 %1027
        %1029 = vrot.lane.b32.xlu0 %v966, 40
        %v1030 = vpop.permute.xlu0 %1029
        %1031 = vrot.lane.b32.xlu0 %v968, 40
        %v1032 = vpop.permute.xlu0 %1031
        %1067 = vrot.lane.b32.xlu0 %v314, 48
        %v1068 = vpop.permute.xlu0 %1067
        %1069 = vrot.lane.b32.xlu0 %v315, 48
        %v1070 = vpop.permute.xlu0 %1069
        %1071 = vrot.lane.b32.xlu0 %v317, 48
        %v1072 = vpop.permute.xlu0 %1071
        %1073 = vrot.lane.b32.xlu0 %v318, 48
        %v1074 = vpop.permute.xlu0 %1073
        %1075 = vrot.lane.b32.xlu0 %v320, 48
        %v1076 = vpop.permute.xlu0 %1075
        %1077 = vrot.lane.b32.xlu0 %v321, 48
        %v1078 = vpop.permute.xlu0 %1077
        %1079 = vrot.lane.b32.xlu0 %v323, 48
        %v1080 = vpop.permute.xlu0 %1079
        %1081 = vrot.lane.b32.xlu0 %v324, 48
        %v1082 = vpop.permute.xlu0 %1081
        %1083 = vrot.lane.b32.xlu0 %v326, 48
        %v1084 = vpop.permute.xlu0 %1083
        %1085 = vrot.lane.b32.xlu0 %v327, 48
        %v1086 = vpop.permute.xlu0 %1085
        %1087 = vrot.lane.b32.xlu0 %v329, 48
        %v1088 = vpop.permute.xlu0 %1087
        %1089 = vrot.lane.b32.xlu0 %v330, 48
        %v1090 = vpop.permute.xlu0 %1089
        %1091 = vrot.lane.b32.xlu0 %v332, 48
        %v1092 = vpop.permute.xlu0 %1091
        %1093 = vrot.lane.b32.xlu0 %v333, 48
        %v1094 = vpop.permute.xlu0 %1093
        %1095 = vrot.lane.b32.xlu0 %v335, 48
        %v1096 = vpop.permute.xlu0 %1095
        %1097 = vrot.lane.b32.xlu0 %v336, 48
        %v1098 = vpop.permute.xlu0 %1097
        %1099 = vrot.lane.b32.xlu0 %v338, 48
        %v1100 = vpop.permute.xlu0 %1099
        %1101 = vrot.lane.b32.xlu0 %v339, 48
        %v1102 = vpop.permute.xlu0 %1101
        %1103 = vrot.lane.b32.xlu0 %v341, 48
        %v1104 = vpop.permute.xlu0 %1103
        %1105 = vrot.lane.b32.xlu0 %v342, 48
        %v1106 = vpop.permute.xlu0 %1105
        %1107 = vrot.lane.b32.xlu0 %v344, 48
        %v1108 = vpop.permute.xlu0 %1107
        %1109 = vrot.lane.b32.xlu0 %v345, 48
        %v1110 = vpop.permute.xlu0 %1109
        %1111 = vrot.lane.b32.xlu0 %v347, 48
        %v1112 = vpop.permute.xlu0 %1111
        %1113 = vrot.lane.b32.xlu0 %v348, 48
        %v1114 = vpop.permute.xlu0 %1113
        %1115 = vrot.lane.b32.xlu0 %v350, 48
        %v1116 = vpop.permute.xlu0 %1115
        %1117 = vrot.lane.b32.xlu0 %v351, 48
        %v1118 = vpop.permute.xlu0 %1117
        %1119 = vrot.lane.b32.xlu0 %v353, 48
        %v1120 = vpop.permute.xlu0 %1119
        %1121 = vrot.lane.b32.xlu0 %v354, 48
        %v1122 = vpop.permute.xlu0 %1121
        %1123 = vrot.lane.b32.xlu0 %v356, 48
        %v1124 = vpop.permute.xlu0 %1123
        %1125 = vrot.lane.b32.xlu0 %v357, 48
        %v1126 = vpop.permute.xlu0 %1125
        %1127 = vrot.lane.b32.xlu0 %v359, 48
        %v1128 = vpop.permute.xlu0 %1127
        %1129 = vrot.lane.b32.xlu0 %v360, 48
        %v1130 = vpop.permute.xlu0 %1129
        %v1164 = vrot.slane %v359, 1
        %v1165 = vrot.slane %v360, 1
        %v1166 = vsel %vm410, %v1164, %v1165
        %v1167 = vrot.slane %v361, 1
        %v1168 = vsel %vm410, %v1165, %v1167
        %1169 = vrot.lane.b32.xlu0 %v423, 56
        %v1170 = vpop.permute.xlu0 %1169
        %1171 = vrot.lane.b32.xlu0 %v425, 56
        %v1172 = vpop.permute.xlu0 %1171
        %1173 = vrot.lane.b32.xlu0 %v428, 56
        %v1174 = vpop.permute.xlu0 %1173
        %1175 = vrot.lane.b32.xlu0 %v430, 56
        %v1176 = vpop.permute.xlu0 %1175
        %1177 = vrot.lane.b32.xlu0 %v433, 56
        %v1178 = vpop.permute.xlu0 %1177
        %1179 = vrot.lane.b32.xlu0 %v435, 56
        %v1180 = vpop.permute.xlu0 %1179
        %1181 = vrot.lane.b32.xlu0 %v438, 56
        %v1182 = vpop.permute.xlu0 %1181
        %1183 = vrot.lane.b32.xlu0 %v440, 56
        %v1184 = vpop.permute.xlu0 %1183
        %1185 = vrot.lane.b32.xlu0 %v443, 56
        %v1186 = vpop.permute.xlu0 %1185
        %1187 = vrot.lane.b32.xlu0 %v445, 56
        %v1188 = vpop.permute.xlu0 %1187
        %1189 = vrot.lane.b32.xlu0 %v448, 56
        %v1190 = vpop.permute.xlu0 %1189
        %1191 = vrot.lane.b32.xlu0 %v450, 56
        %v1192 = vpop.permute.xlu0 %1191
        %1193 = vrot.lane.b32.xlu0 %v453, 56
        %v1194 = vpop.permute.xlu0 %1193
        %1195 = vrot.lane.b32.xlu0 %v455, 56
        %v1196 = vpop.permute.xlu0 %1195
        %1197 = vrot.lane.b32.xlu0 %v458, 56
        %v1198 = vpop.permute.xlu0 %1197
        %1199 = vrot.lane.b32.xlu0 %v460, 56
        %v1200 = vpop.permute.xlu0 %1199
        %1201 = vrot.lane.b32.xlu0 %v463, 56
        %v1202 = vpop.permute.xlu0 %1201
        %1203 = vrot.lane.b32.xlu0 %v465, 56
        %v1204 = vpop.permute.xlu0 %1203
        %1205 = vrot.lane.b32.xlu0 %v468, 56
        %v1206 = vpop.permute.xlu0 %1205
        %1207 = vrot.lane.b32.xlu0 %v470, 56
        %v1208 = vpop.permute.xlu0 %1207
        %1209 = vrot.lane.b32.xlu0 %v473, 56
        %v1210 = vpop.permute.xlu0 %1209
        %1211 = vrot.lane.b32.xlu0 %v475, 56
        %v1212 = vpop.permute.xlu0 %1211
        %1213 = vrot.lane.b32.xlu0 %v478, 56
        %v1214 = vpop.permute.xlu0 %1213
        %1215 = vrot.lane.b32.xlu0 %v480, 56
        %v1216 = vpop.permute.xlu0 %1215
        %1217 = vrot.lane.b32.xlu0 %v483, 56
        %v1218 = vpop.permute.xlu0 %1217
        %1219 = vrot.lane.b32.xlu0 %v485, 56
        %v1220 = vpop.permute.xlu0 %1219
        %1221 = vrot.lane.b32.xlu0 %v488, 56
        %v1222 = vpop.permute.xlu0 %1221
        %1223 = vrot.lane.b32.xlu0 %v490, 56
        %v1224 = vpop.permute.xlu0 %1223
        %1225 = vrot.lane.b32.xlu0 %v865, 56
        %v1226 = vpop.permute.xlu0 %1225
        %1227 = vrot.lane.b32.xlu0 %v867, 56
        %v1228 = vpop.permute.xlu0 %1227
        %1229 = vrot.lane.b32.xlu0 %v1166, 56
        %v1230 = vpop.permute.xlu0 %1229
        %1231 = vrot.lane.b32.xlu0 %v1168, 56
        %v1232 = vpop.permute.xlu0 %1231
        %v1265 = vrot.slane %v359, 2
        %v1266 = vrot.slane %v360, 2
        %v1267 = vsel %vm587, %v1265, %v1266
        %v1268 = vrot.slane %v361, 2
        %v1269 = vsel %vm587, %v1266, %v1268
        %1270 = vrot.lane.b32.xlu0 %v600, 64
        %v1271 = vpop.permute.xlu0 %1270
        %1272 = vrot.lane.b32.xlu0 %v602, 64
        %v1273 = vpop.permute.xlu0 %1272
        %1274 = vrot.lane.b32.xlu0 %v605, 64
        %v1275 = vpop.permute.xlu0 %1274
        %1276 = vrot.lane.b32.xlu0 %v607, 64
        %v1277 = vpop.permute.xlu0 %1276
        %1278 = vrot.lane.b32.xlu0 %v610, 64
        %v1279 = vpop.permute.xlu0 %1278
        %1280 = vrot.lane.b32.xlu0 %v612, 64
        %v1281 = vpop.permute.xlu0 %1280
        %1282 = vrot.lane.b32.xlu0 %v615, 64
        %v1283 = vpop.permute.xlu0 %1282
        %1284 = vrot.lane.b32.xlu0 %v617, 64
        %v1285 = vpop.permute.xlu0 %1284
        %1286 = vrot.lane.b32.xlu0 %v620, 64
        %v1287 = vpop.permute.xlu0 %1286
        %1288 = vrot.lane.b32.xlu0 %v622, 64
        %v1289 = vpop.permute.xlu0 %1288
        %1290 = vrot.lane.b32.xlu0 %v625, 64
        %v1291 = vpop.permute.xlu0 %1290
        %1292 = vrot.lane.b32.xlu0 %v627, 64
        %v1293 = vpop.permute.xlu0 %1292
        %1294 = vrot.lane.b32.xlu0 %v630, 64
        %v1295 = vpop.permute.xlu0 %1294
        %1296 = vrot.lane.b32.xlu0 %v632, 64
        %v1297 = vpop.permute.xlu0 %1296
        %1298 = vrot.lane.b32.xlu0 %v635, 64
        %v1299 = vpop.permute.xlu0 %1298
        %1300 = vrot.lane.b32.xlu0 %v637, 64
        %v1301 = vpop.permute.xlu0 %1300
        %1302 = vrot.lane.b32.xlu0 %v640, 64
        %v1303 = vpop.permute.xlu0 %1302
        %1304 = vrot.lane.b32.xlu0 %v642, 64
        %v1305 = vpop.permute.xlu0 %1304
        %1306 = vrot.lane.b32.xlu0 %v645, 64
        %v1307 = vpop.permute.xlu0 %1306
        %1308 = vrot.lane.b32.xlu0 %v647, 64
        %v1309 = vpop.permute.xlu0 %1308
        %1310 = vrot.lane.b32.xlu0 %v650, 64
        %v1311 = vpop.permute.xlu0 %1310
        %1312 = vrot.lane.b32.xlu0 %v652, 64
        %v1313 = vpop.permute.xlu0 %1312
        %1314 = vrot.lane.b32.xlu0 %v655, 64
        %v1315 = vpop.permute.xlu0 %1314
        %1316 = vrot.lane.b32.xlu0 %v657, 64
        %v1317 = vpop.permute.xlu0 %1316
        %1318 = vrot.lane.b32.xlu0 %v660, 64
        %v1319 = vpop.permute.xlu0 %1318
        %1320 = vrot.lane.b32.xlu0 %v662, 64
        %v1321 = vpop.permute.xlu0 %1320
        %1322 = vrot.lane.b32.xlu0 %v665, 64
        %v1323 = vpop.permute.xlu0 %1322
        %1324 = vrot.lane.b32.xlu0 %v667, 64
        %v1325 = vpop.permute.xlu0 %1324
        %1326 = vrot.lane.b32.xlu0 %v966, 64
        %v1327 = vpop.permute.xlu0 %1326
        %1328 = vrot.lane.b32.xlu0 %v968, 64
        %v1329 = vpop.permute.xlu0 %1328
        %1330 = vrot.lane.b32.xlu0 %v1267, 64
        %v1331 = vpop.permute.xlu0 %1330
        %1332 = vrot.lane.b32.xlu0 %v1269, 64
        %v1333 = vpop.permute.xlu0 %1332
        %vm1366 = vcmask 64512
        %v1367 = vsel %vm1366, %v308, %v492
        %v1368 = vsel %vm1366, %v309, %v494
        %v1369 = vsel %vm1366, %v311, %v496
        %v1370 = vsel %vm1366, %v312, %v498
        %v1371 = vsel %vm1366, %v314, %v500
        %v1372 = vsel %vm1366, %v315, %v502
        %v1373 = vsel %vm1366, %v317, %v504
        %v1374 = vsel %vm1366, %v318, %v506
        %v1375 = vsel %vm1366, %v320, %v508
        %v1376 = vsel %vm1366, %v321, %v510
        %v1377 = vsel %vm1366, %v323, %v512
        %v1378 = vsel %vm1366, %v324, %v514
        %v1379 = vsel %vm1366, %v326, %v516
        %v1380 = vsel %vm1366, %v327, %v518
        %v1381 = vsel %vm1366, %v329, %v520
        %v1382 = vsel %vm1366, %v330, %v522
        %v1383 = vsel %vm1366, %v332, %v524
        %v1384 = vsel %vm1366, %v333, %v526
        %v1385 = vsel %vm1366, %v335, %v528
        %v1386 = vsel %vm1366, %v336, %v530
        %v1387 = vsel %vm1366, %v338, %v532
        %v1388 = vsel %vm1366, %v339, %v534
        %v1389 = vsel %vm1366, %v341, %v536
        %v1390 = vsel %vm1366, %v342, %v538
        %v1391 = vsel %vm1366, %v344, %v540
        %v1392 = vsel %vm1366, %v345, %v542
        %v1393 = vsel %vm1366, %v347, %v544
        %v1394 = vsel %vm1366, %v348, %v546
        %v1395 = vsel %vm1366, %v350, %v548
        %v1396 = vsel %vm1366, %v351, %v550
        %v1397 = vsel %vm1366, %v353, %v552
        %v1398 = vsel %vm1366, %v354, %v554
        %vm1399 = vcmask 130048
        %v1400 = vsel %vm1399, %v1367, %v669
        %v1401 = vsel %vm1399, %v1368, %v671
        %v1402 = vsel %vm1399, %v1369, %v673
        %v1403 = vsel %vm1399, %v1370, %v675
        %v1404 = vsel %vm1399, %v1371, %v677
        %v1405 = vsel %vm1399, %v1372, %v679
        %v1406 = vsel %vm1399, %v1373, %v681
        %v1407 = vsel %vm1399, %v1374, %v683
        %v1408 = vsel %vm1399, %v1375, %v685
        %v1409 = vsel %vm1399, %v1376, %v687
        %v1410 = vsel %vm1399, %v1377, %v689
        %v1411 = vsel %vm1399, %v1378, %v691
        %v1412 = vsel %vm1399, %v1379, %v693
        %v1413 = vsel %vm1399, %v1380, %v695
        %v1414 = vsel %vm1399, %v1381, %v697
        %v1415 = vsel %vm1399, %v1382, %v699
        %v1416 = vsel %vm1399, %v1383, %v701
        %v1417 = vsel %vm1399, %v1384, %v703
        %v1418 = vsel %vm1399, %v1385, %v705
        %v1419 = vsel %vm1399, %v1386, %v707
        %v1420 = vsel %vm1399, %v1387, %v709
        %v1421 = vsel %vm1399, %v1388, %v711
        %v1422 = vsel %vm1399, %v1389, %v713
        %v1423 = vsel %vm1399, %v1390, %v715
        %v1424 = vsel %vm1399, %v1391, %v717
        %v1425 = vsel %vm1399, %v1392, %v719
        %v1426 = vsel %vm1399, %v1393, %v721
        %v1427 = vsel %vm1399, %v1394, %v723
        %v1428 = vsel %vm1399, %v1395, %v725
        %v1429 = vsel %vm1399, %v1396, %v727
        %v1430 = vsel %vm1399, %v1397, %v729
        %v1431 = vsel %vm1399, %v1398, %v731
        %vm1432 = vcmask 195584
        %v1433 = vsel %vm1432, %v1400, %v767
        %v1434 = vsel %vm1432, %v1401, %v769
        %v1435 = vsel %vm1432, %v1402, %v771
        %v1436 = vsel %vm1432, %v1403, %v773
        %v1437 = vsel %vm1432, %v1404, %v775
        %v1438 = vsel %vm1432, %v1405, %v777
        %v1439 = vsel %vm1432, %v1406, %v779
        %v1440 = vsel %vm1432, %v1407, %v781
        %v1441 = vsel %vm1432, %v1408, %v783
        %v1442 = vsel %vm1432, %v1409, %v785
        %v1443 = vsel %vm1432, %v1410, %v787
        %v1444 = vsel %vm1432, %v1411, %v789
        %v1445 = vsel %vm1432, %v1412, %v791
        %v1446 = vsel %vm1432, %v1413, %v793
        %v1447 = vsel %vm1432, %v1414, %v795
        %v1448 = vsel %vm1432, %v1415, %v797
        %v1449 = vsel %vm1432, %v1416, %v799
        %v1450 = vsel %vm1432, %v1417, %v801
        %v1451 = vsel %vm1432, %v1418, %v803
        %v1452 = vsel %vm1432, %v1419, %v805
        %v1453 = vsel %vm1432, %v1420, %v807
        %v1454 = vsel %vm1432, %v1421, %v809
        %v1455 = vsel %vm1432, %v1422, %v811
        %v1456 = vsel %vm1432, %v1423, %v813
        %v1457 = vsel %vm1432, %v1424, %v815
        %v1458 = vsel %vm1432, %v1425, %v817
        %v1459 = vsel %vm1432, %v1426, %v819
        %v1460 = vsel %vm1432, %v1427, %v821
        %v1461 = vsel %vm1432, %v1428, %v823
        %v1462 = vsel %vm1432, %v1429, %v825
        %v1463 = vsel %vm1432, %v1430, %v827
        %v1464 = vsel %vm1432, %v1431, %v829
        %vm1465 = vcmask 261120
        %v1466 = vsel %vm1465, %v1433, %v869
        %v1467 = vsel %vm1465, %v1434, %v871
        %v1468 = vsel %vm1465, %v1435, %v873
        %v1469 = vsel %vm1465, %v1436, %v875
        %v1470 = vsel %vm1465, %v1437, %v877
        %v1471 = vsel %vm1465, %v1438, %v879
        %v1472 = vsel %vm1465, %v1439, %v881
        %v1473 = vsel %vm1465, %v1440, %v883
        %v1474 = vsel %vm1465, %v1441, %v885
        %v1475 = vsel %vm1465, %v1442, %v887
        %v1476 = vsel %vm1465, %v1443, %v889
        %v1477 = vsel %vm1465, %v1444, %v891
        %v1478 = vsel %vm1465, %v1445, %v893
        %v1479 = vsel %vm1465, %v1446, %v895
        %v1480 = vsel %vm1465, %v1447, %v897
        %v1481 = vsel %vm1465, %v1448, %v899
        %v1482 = vsel %vm1465, %v1449, %v901
        %v1483 = vsel %vm1465, %v1450, %v903
        %v1484 = vsel %vm1465, %v1451, %v905
        %v1485 = vsel %vm1465, %v1452, %v907
        %v1486 = vsel %vm1465, %v1453, %v909
        %v1487 = vsel %vm1465, %v1454, %v911
        %v1488 = vsel %vm1465, %v1455, %v913
        %v1489 = vsel %vm1465, %v1456, %v915
        %v1490 = vsel %vm1465, %v1457, %v917
        %v1491 = vsel %vm1465, %v1458, %v919
        %v1492 = vsel %vm1465, %v1459, %v921
        %v1493 = vsel %vm1465, %v1460, %v923
        %v1494 = vsel %vm1465, %v1461, %v925
        %v1495 = vsel %vm1465, %v1462, %v927
        %v1496 = vsel %vm1465, %v1463, %v929
        %v1497 = vsel %vm1465, %v1464, %v931
        %vm1498 = vcmask 326656
        %v1499 = vsel %vm1498, %v1466, %v970
        %v1500 = vsel %vm1498, %v1467, %v972
        %v1501 = vsel %vm1498, %v1468, %v974
        %v1502 = vsel %vm1498, %v1469, %v976
        %v1503 = vsel %vm1498, %v1470, %v978
        %v1504 = vsel %vm1498, %v1471, %v980
        %v1505 = vsel %vm1498, %v1472, %v982
        %v1506 = vsel %vm1498, %v1473, %v984
        %v1507 = vsel %vm1498, %v1474, %v986
        %v1508 = vsel %vm1498, %v1475, %v988
        %v1509 = vsel %vm1498, %v1476, %v990
        %v1510 = vsel %vm1498, %v1477, %v992
        %v1511 = vsel %vm1498, %v1478, %v994
        %v1512 = vsel %vm1498, %v1479, %v996
        %v1513 = vsel %vm1498, %v1480, %v998
        %v1514 = vsel %vm1498, %v1481, %v1000
        %v1515 = vsel %vm1498, %v1482, %v1002
        %v1516 = vsel %vm1498, %v1483, %v1004
        %v1517 = vsel %vm1498, %v1484, %v1006
        %v1518 = vsel %vm1498, %v1485, %v1008
        %v1519 = vsel %vm1498, %v1486, %v1010
        %v1520 = vsel %vm1498, %v1487, %v1012
        %v1521 = vsel %vm1498, %v1488, %v1014
        %v1522 = vsel %vm1498, %v1489, %v1016
        %v1523 = vsel %vm1498, %v1490, %v1018
        %v1524 = vsel %vm1498, %v1491, %v1020
        %v1525 = vsel %vm1498, %v1492, %v1022
        %v1526 = vsel %vm1498, %v1493, %v1024
        %v1527 = vsel %vm1498, %v1494, %v1026
        %v1528 = vsel %vm1498, %v1495, %v1028
        %v1529 = vsel %vm1498, %v1496, %v1030
        %v1530 = vsel %vm1498, %v1497, %v1032
        %vm1531 = vcmask 392192
        %v1532 = vsel %vm1531, %v1499, %v1068
        %v1533 = vsel %vm1531, %v1500, %v1070
        %v1534 = vsel %vm1531, %v1501, %v1072
        %v1535 = vsel %vm1531, %v1502, %v1074
        %v1536 = vsel %vm1531, %v1503, %v1076
        %v1537 = vsel %vm1531, %v1504, %v1078
        %v1538 = vsel %vm1531, %v1505, %v1080
        %v1539 = vsel %vm1531, %v1506, %v1082
        %v1540 = vsel %vm1531, %v1507, %v1084
        %v1541 = vsel %vm1531, %v1508, %v1086
        %v1542 = vsel %vm1531, %v1509, %v1088
        %v1543 = vsel %vm1531, %v1510, %v1090
        %v1544 = vsel %vm1531, %v1511, %v1092
        %v1545 = vsel %vm1531, %v1512, %v1094
        %v1546 = vsel %vm1531, %v1513, %v1096
        %v1547 = vsel %vm1531, %v1514, %v1098
        %v1548 = vsel %vm1531, %v1515, %v1100
        %v1549 = vsel %vm1531, %v1516, %v1102
        %v1550 = vsel %vm1531, %v1517, %v1104
        %v1551 = vsel %vm1531, %v1518, %v1106
        %v1552 = vsel %vm1531, %v1519, %v1108
        %v1553 = vsel %vm1531, %v1520, %v1110
        %v1554 = vsel %vm1531, %v1521, %v1112
        %v1555 = vsel %vm1531, %v1522, %v1114
        %v1556 = vsel %vm1531, %v1523, %v1116
        %v1557 = vsel %vm1531, %v1524, %v1118
        %v1558 = vsel %vm1531, %v1525, %v1120
        %v1559 = vsel %vm1531, %v1526, %v1122
        %v1560 = vsel %vm1531, %v1527, %v1124
        %v1561 = vsel %vm1531, %v1528, %v1126
        %v1562 = vsel %vm1531, %v1529, %v1128
        %v1563 = vsel %vm1531, %v1530, %v1130
        %vm1564 = vcmask 457728
        %v1565 = vsel %vm1564, %v1532, %v1170
        %v1566 = vsel %vm1564, %v1533, %v1172
        %v1567 = vsel %vm1564, %v1534, %v1174
        %v1568 = vsel %vm1564, %v1535, %v1176
        %v1569 = vsel %vm1564, %v1536, %v1178
        %v1570 = vsel %vm1564, %v1537, %v1180
        %v1571 = vsel %vm1564, %v1538, %v1182
        %v1572 = vsel %vm1564, %v1539, %v1184
        %v1573 = vsel %vm1564, %v1540, %v1186
        %v1574 = vsel %vm1564, %v1541, %v1188
        %v1575 = vsel %vm1564, %v1542, %v1190
        %v1576 = vsel %vm1564, %v1543, %v1192
        %v1577 = vsel %vm1564, %v1544, %v1194
        %v1578 = vsel %vm1564, %v1545, %v1196
        %v1579 = vsel %vm1564, %v1546, %v1198
        %v1580 = vsel %vm1564, %v1547, %v1200
        %v1581 = vsel %vm1564, %v1548, %v1202
        %v1582 = vsel %vm1564, %v1549, %v1204
        %v1583 = vsel %vm1564, %v1550, %v1206
        %v1584 = vsel %vm1564, %v1551, %v1208
        %v1585 = vsel %vm1564, %v1552, %v1210
        %v1586 = vsel %vm1564, %v1553, %v1212
        %v1587 = vsel %vm1564, %v1554, %v1214
        %v1588 = vsel %vm1564, %v1555, %v1216
        %v1589 = vsel %vm1564, %v1556, %v1218
        %v1590 = vsel %vm1564, %v1557, %v1220
        %v1591 = vsel %vm1564, %v1558, %v1222
        %v1592 = vsel %vm1564, %v1559, %v1224
        %v1593 = vsel %vm1564, %v1560, %v1226
        %v1594 = vsel %vm1564, %v1561, %v1228
        %v1595 = vsel %vm1564, %v1562, %v1230
        %v1596 = vsel %vm1564, %v1563, %v1232
        %vm1597 = vcmask 523264
        %v1598 = vsel %vm1597, %v1565, %v1271
        %v1599 = vsel %vm1597, %v1566, %v1273
        %v1600 = vsel %vm1597, %v1567, %v1275
        %v1601 = vsel %vm1597, %v1568, %v1277
        %v1602 = vsel %vm1597, %v1569, %v1279
        %v1603 = vsel %vm1597, %v1570, %v1281
        %v1604 = vsel %vm1597, %v1571, %v1283
        %v1605 = vsel %vm1597, %v1572, %v1285
        %v1606 = vsel %vm1597, %v1573, %v1287
        %v1607 = vsel %vm1597, %v1574, %v1289
        %v1608 = vsel %vm1597, %v1575, %v1291
        %v1609 = vsel %vm1597, %v1576, %v1293
        %v1610 = vsel %vm1597, %v1577, %v1295
        %v1611 = vsel %vm1597, %v1578, %v1297
        %v1612 = vsel %vm1597, %v1579, %v1299
        %v1613 = vsel %vm1597, %v1580, %v1301
        %v1614 = vsel %vm1597, %v1581, %v1303
        %v1615 = vsel %vm1597, %v1582, %v1305
        %v1616 = vsel %vm1597, %v1583, %v1307
        %v1617 = vsel %vm1597, %v1584, %v1309
        %v1618 = vsel %vm1597, %v1585, %v1311
        %v1619 = vsel %vm1597, %v1586, %v1313
        %v1620 = vsel %vm1597, %v1587, %v1315
        %v1621 = vsel %vm1597, %v1588, %v1317
        %v1622 = vsel %vm1597, %v1589, %v1319
        %v1623 = vsel %vm1597, %v1590, %v1321
        %v1624 = vsel %vm1597, %v1591, %v1323
        %v1625 = vsel %vm1597, %v1592, %v1325
        %v1626 = vsel %vm1597, %v1593, %v1327
        %v1627 = vsel %vm1597, %v1594, %v1329
        %v1628 = vsel %vm1597, %v1595, %v1331
        %v1629 = vsel %vm1597, %v1596, %v1333
        %vm1630 = vcmask 588800
        %v1631 = vsel %vm1630, %v1598, 0.0
        %v1632 = vsel %vm1630, %v1599, 0.0
        %v1633 = vsel %vm1630, %v1600, 0.0
        %v1634 = vsel %vm1630, %v1601, 0.0
        %v1635 = vsel %vm1630, %v1602, 0.0
        %v1636 = vsel %vm1630, %v1603, 0.0
        %v1637 = vsel %vm1630, %v1604, 0.0
        %v1638 = vsel %vm1630, %v1605, 0.0
        %v1639 = vsel %vm1630, %v1606, 0.0
        %v1640 = vsel %vm1630, %v1607, 0.0
        %v1641 = vsel %vm1630, %v1608, 0.0
        %v1642 = vsel %vm1630, %v1609, 0.0
        %v1643 = vsel %vm1630, %v1610, 0.0
        %v1644 = vsel %vm1630, %v1611, 0.0
        %v1645 = vsel %vm1630, %v1612, 0.0
        %v1646 = vsel %vm1630, %v1613, 0.0
        %v1647 = vsel %vm1630, %v1614, 0.0
        %v1648 = vsel %vm1630, %v1615, 0.0
        %v1649 = vsel %vm1630, %v1616, 0.0
        %v1650 = vsel %vm1630, %v1617, 0.0
        %v1651 = vsel %vm1630, %v1618, 0.0
        %v1652 = vsel %vm1630, %v1619, 0.0
        %v1653 = vsel %vm1630, %v1620, 0.0
        %v1654 = vsel %vm1630, %v1621, 0.0
        %v1655 = vsel %vm1630, %v1622, 0.0
        %v1656 = vsel %vm1630, %v1623, 0.0
        %v1657 = vsel %vm1630, %v1624, 0.0
        %v1658 = vsel %vm1630, %v1625, 0.0
        %v1659 = vsel %vm1630, %v1626, 0.0
        %v1660 = vsel %vm1630, %v1627, 0.0
        %v1661 = vsel %vm1630, %v1628, 0.0
        %v1662 = vsel %vm1630, %v1629, 0.0
        %v1663 = vld [vmem:[%s2] sm:$0xff]
        %v1664 = vld [vmem:[%s2 + $0x8] sm:$0xff]
        %v1665 = vld [vmem:[%s3] sm:$0xff]
        %v1666 = vld [vmem:[%s3 + $0x8] sm:$0xff]
        %1668 = vset.pattern.permute.xlu0 0
        %1669 = vperm.xlu0 %1668, %v1665
        %v1670 = vpop.permute.xlu0 %1669
        %1673 = vset.pattern.permute.xlu0 0
        %1674 = vperm.xlu0 %1673, %v1666
        %v1675 = vpop.permute.xlu0 %1674
        %1677 = vmatprep.subr.mxu0 0.0
        %1678 = vmatpush1.xpose.msra.mxu0 %v1646
        %1679 = vmatprep.subr.mxu0 0.0
        %1680 = vmatpush1.xpose.msra.mxu0 %v1645
        %1681 = vmatprep.subr.mxu0 0.0
        %1682 = vmatpush1.xpose.msra.mxu0 %v1644
        %1683 = vmatprep.subr.mxu0 0.0
        %1684 = vmatpush1.xpose.msra.mxu0 %v1643
        %1685 = vmatprep.subr.mxu0 0.0
        %1686 = vmatpush1.xpose.msra.mxu0 %v1642
        %1687 = vmatprep.subr.mxu0 0.0
        %1688 = vmatpush1.xpose.msra.mxu0 %v1641
        %1689 = vmatprep.subr.mxu0 0.0
        %1690 = vmatpush1.xpose.msra.mxu0 %v1640
        %1691 = vmatprep.subr.mxu0 0.0
        %1692 = vmatpush1.xpose.msra.mxu0 %v1639
        %1693 = vmatprep.subr.mxu0 0.0
        %1694 = vmatpush1.xpose.msra.mxu0 %v1638
        %1695 = vmatprep.subr.mxu0 0.0
        %1696 = vmatpush1.xpose.msra.mxu0 %v1637
        %1697 = vmatprep.subr.mxu0 0.0
        %1698 = vmatpush1.xpose.msra.mxu0 %v1636
        %1699 = vmatprep.subr.mxu0 0.0
        %1700 = vmatpush1.xpose.msra.mxu0 %v1635
        %1701 = vmatprep.subr.mxu0 0.0
        %1702 = vmatpush1.xpose.msra.mxu0 %v1634
        %1703 = vmatprep.subr.mxu0 0.0
        %1704 = vmatpush1.xpose.msra.mxu0 %v1633
        %1705 = vmatprep.subr.mxu0 0.0
        %1706 = vmatpush1.xpose.msra.mxu0 %v1632
        %1707 = vmatprep.subr.mxu0 0.0
        %1708 = vmatpush1.xpose.msra.mxu0 %v1631
        %1709 = vmatprep.subr.mxu0 0.0
        %1710 = vmatpush2.xpose.msra.mxu0 %v1662
        %1711 = vmatprep.subr.mxu0 0.0
        %1712 = vmatpush2.xpose.msra.mxu0 %v1661
        %1713 = vmatprep.subr.mxu0 0.0
        %1714 = vmatpush2.xpose.msra.mxu0 %v1660
        %1715 = vmatprep.subr.mxu0 0.0
        %1716 = vmatpush2.xpose.msra.mxu0 %v1659
        %1717 = vmatprep.subr.mxu0 0.0
        %1718 = vmatpush2.xpose.msra.mxu0 %v1658
        %1719 = vmatprep.subr.mxu0 0.0
        %1720 = vmatpush2.xpose.msra.mxu0 %v1657
        %1721 = vmatprep.subr.mxu0 0.0
        %1722 = vmatpush2.xpose.msra.mxu0 %v1656
        %1723 = vmatprep.subr.mxu0 0.0
        %1724 = vmatpush2.xpose.msra.mxu0 %v1655
        %1725 = vmatprep.subr.mxu0 0.0
        %1726 = vmatpush2.xpose.msra.mxu0 %v1654
        %1727 = vmatprep.subr.mxu0 0.0
        %1728 = vmatpush2.xpose.msra.mxu0 %v1653
        %1729 = vmatprep.subr.mxu0 0.0
        %1730 = vmatpush2.xpose.msra.mxu0 %v1652
        %1731 = vmatprep.subr.mxu0 0.0
        %1732 = vmatpush2.xpose.msra.mxu0 %v1651
        %1733 = vmatprep.subr.mxu0 0.0
        %1734 = vmatpush2.xpose.msra.mxu0 %v1650
        %1735 = vmatprep.subr.mxu0 0.0
        %1736 = vmatpush2.xpose.msra.mxu0 %v1649
        %1737 = vmatprep.subr.mxu0 0.0
        %1738 = vmatpush2.xpose.msra.mxu0 %v1648
        %1739 = vmatprep.subr.mxu0 0.0
        %1740 = vmatpush2.xpose.msra.mxu0 %v1647
        %1741 = vmatprep.mubr.f32.mxu0 0.0
        %1742 = vmatmul.mubr.f32.gmra.mxu0 %v1663
        %v1743 = vpop.f32.mrf.mxu0
        %v1744 = vadd.f32 %v1670, %v1743
        %v1745 = vpop.f32.mrf.mxu0
        %v1746 = vadd.f32 %v1670, %v1745
        %1747 = vmatprep.mubr.f32.mxu0 0.0
        %1748 = vmatmul.mubr.f32.gmra.mxu0 %v1664
        %v1749 = vpop.f32.mrf.mxu0
        %v1750 = vadd.f32 %v1675, %v1749
        %v1751 = vpop.f32.mrf.mxu0
        %v1752 = vadd.f32 %v1675, %v1751
        %1753 = vdwg.mxu0
        %1754 = vst [vmem:[%s270] sm:$0xff] %v1744
        %1755 = vst [vmem:[%s270 + $0x8] sm:$0xff] %v1746
        %1756 = vst [vmem:[%s270 + $0x10] sm:$0xff] %v1750
        %1757 = vst [vmem:[%s270 + $0x18] sm:$0xff] %v1752
        %s1758 = sand.u32 %s142, 1
        %s1759 = scalar_lea.sflag [#allocation3], %s1758
        %s1760 = sand.u32 %s142, 1
        %s1761 = smul.addr %s1760, 32
        %s1762 = scalar_lea.vmem [#allocation2], %s1761
        // Predicated region
        $region37: #{tpu_custom_call.1} parent=35 // pred_check
          %p1763 = pneg %p152
        $region38: #{tpu_custom_call.1} parent=35 // pred_check_branch
          %1765 = sbr.rel (%p1763) target = $region40
        $region39: #{tpu_custom_call.1} parent=35 // pred_region
          %s1766 = smul.u32 2, %s23
          %s1768 = ssub.s32 512, 512
          %1769 = vsyncadd %s1759, %s1768
          %s1770 = smul.addr %s22, 4
          %s1771 = sadd.s32 %s1766, %s1770
          %s1772 = smul.addr %s1771, 128
          %s1773 = scalar_lea.hbm %s4, %s1772
          %s1774 = sshll.u32 %s1762, 4
          %s1775 = int_to_ptr.vmem [resolvable:$true] %s1774
          %1780 = dma.vmem_to_hbm [thread:$0]  %s1775, 512, %s1773, %s1759, 256, 256, 16
        $region40: #{tpu_custom_call.1} parent=35 // pred_fallthru
          _
      $region36: #{tpu_custom_call.1} parent=5 // pred_fallthru
        _
      %p1781 = scmp.le.s32.totalorder 2, %s13
      // Predicated region
      $region41: #{tpu_custom_call.1} parent=5 // pred_check
        %p1782 = pneg %p1781
      $region42: #{tpu_custom_call.1} parent=5 // pred_check_branch
        %1784 = sbr.rel (%p1782) target = $region44
      $region43: #{tpu_custom_call.1} parent=5 // pred_region
        %s1785 = ssub.s32 %s13, 2
        // Predicated region
        $region45: #{tpu_custom_call.1} parent=43 // pred_check
          %p1786 = pneg %p158
        $region46: #{tpu_custom_call.1} parent=43 // pred_check_branch
          %1788 = sbr.rel (%p1786) target = $region48
        $region47: #{tpu_custom_call.1} parent=43 // pred_region
          %s1789 = sand.u32 %s143, 1
          %s1790 = scalar_lea.sflag [#allocation3], %s1789
          %s1791 = sand.u32 %s143, 1
          %s1792 = smul.addr %s1791, 32
          %s1793 = scalar_lea.vmem [#allocation2], %s1792
          %1794 = dma.done %s1790, 512
        $region48: #{tpu_custom_call.1} parent=43 // pred_fallthru
          _
      $region44: #{tpu_custom_call.1} parent=5 // pred_fallthru
        _
    $region6: #{tpu_custom_call.1} parent=1 // loop_footer
      %s17 = sadd.s32 1, %s13
    $region7: #{tpu_custom_call.1} parent=1 // loop_footer_branch
      %12 = sbr.rel target = $region3
    $region8: #{tpu_custom_call.1} parent=1 // loop_exit
      _
    %1795 = vsyncpa [#allocation3], 1
    %s1796 = scalar_lea.sflag [#allocation3], 1
    %1797 = vsyncpa %s1796, 1

</llo_original>
